<compile_context>
chip_gen: v5e
topology: v5e:2x2
jax: 0.10.0
libtpu: 0.0.40
codegen_flags: <defaults>
</compile_context>

<pallas_src>
import functools

import jax
import jax.numpy as jnp
from jax import lax
from jax.experimental import pallas as pl
from jax.experimental.pallas import tpu as pltpu


# ---------------------------------------------------------------------------
# helpers
# ---------------------------------------------------------------------------

def _silu(v):
    return v * jax.nn.sigmoid(v)


def _default_n_split():
    """2-way edge split only where there are two TensorCores (v7x)."""
    try:
        kind = jax.devices()[0].device_kind.lower()
    except Exception:
        return 1
    return 2 if ("v7" in kind or "7x" in kind) else 1


def _clamp_tile_e(tile_e, n_nodes, stream_pre):
    if not stream_pre:
        # (tile_e, 2N) one-hot + compare/convert temps ~ 6*N bytes per edge row;
        # keep it under ~12 MiB so it also fits v7x's 64 MiB physical VMEM.
        cap = max(32, (12 << 20) // max(1, 6 * n_nodes))
        tile_e = min(tile_e, cap)
    return max(8, (tile_e // 8) * 8)


def _vmem_limit_bytes(n, hd, pw, tile_e, mm_dtype, stream_pre):
    """Explicit scoped-VMEM request from the real buffer budget (with headroom)."""
    mmb = jnp.dtype(mm_dtype).itemsize
    lane = lambda v: max(v, 128)                      # lane padding to 128
    resident = hd * lane(hd) * mmb + 4 * lane(hd) * 4
    if not stream_pre:
        resident += 2 * n * lane(hd) * mmb            # [h@W1a ; h@W1b]
    out_blk = 8 * (n * lane(hd) + max(hd, pw) * lane(n))
    edges = 2 * tile_e * lane(pw) * 4                 # packed stream, double buffered
    pre_in = 2 * tile_e * lane(hd) * mmb if stream_pre else 0
    onehot = 0 if stream_pre else tile_e * 2 * n * (mmb + 8)
    temps = 6 * tile_e * lane(hd) * 4                 # pre / m / msg f32 temps
    est = resident + out_blk + edges + pre_in + onehot + temps
    return int(min(max(2 * est, 32 << 20), 60 << 20))


def _pack_edges(edge_index, edge_attr, edge_mask, coord_diff, n_split, tile_e):
    """One packed per-edge stream: [row, col, edge_mask, edge_attr, coord_diff]."""
    e, edge_dim = edge_attr.shape
    cols = jnp.concatenate(
        [edge_index[0].reshape(e, 1).astype(jnp.float32),
         edge_index[1].reshape(e, 1).astype(jnp.float32),
         edge_mask.reshape(e, 1).astype(jnp.float32),
         edge_attr.astype(jnp.float32),
         coord_diff.astype(jnp.float32)], axis=1)      # (E, 6 + edge_dim)
    pw = max(8, pl.cdiv(cols.shape[1], 8) * 8)
    tps = pl.cdiv(pl.cdiv(e, n_split), tile_e)
    e_pad = n_split * tps * tile_e
    packed = jnp.pad(cols, ((0, e_pad - e), (0, pw - cols.shape[1])))
    return packed, tps


def _pre_edge_activation(h, edge_index, edge_attr, w1, b1, e_pad, mm_dtype):
    """Stream mode: first-layer pre-activation (incl. edge_attr + bias) in XLA."""
    hd = h.shape[1]
    pre = ((h @ w1[:hd])[edge_index[0]] + (h @ w1[hd:2 * hd])[edge_index[1]]
           + edge_attr @ w1[2 * hd:] + b1)
    pre = jnp.pad(pre, ((0, e_pad - pre.shape[0]), (0, 0)))
    return pre.astype(mm_dtype)


def _onehots_gather(row, col, n_nodes, mm_dtype):
    """One iota + or-of-compares; scatter one-hot is the [:, :N] prefix slice."""
    te = row.shape[0]
    i2 = lax.broadcasted_iota(jnp.int32, (te, 2 * n_nodes), 1)
    oh_f32 = ((i2 == row) | (i2 == col + n_nodes)).astype(jnp.float32)
    oh2 = oh_f32 if mm_dtype == jnp.float32 else oh_f32.astype(mm_dtype)
    return oh2, oh2[:, :n_nodes]


def _onehot_row(row, n_nodes, mm_dtype):
    te = row.shape[0]
    i1 = lax.broadcasted_iota(jnp.int32, (te, n_nodes), 1)
    oh_f32 = (i1 == row).astype(jnp.float32)
    return oh_f32 if mm_dtype == jnp.float32 else oh_f32.astype(mm_dtype)


# ---------------------------------------------------------------------------
# GCL edge kernel: gated messages + unsorted_segment_sum over destination nodes
# ---------------------------------------------------------------------------

def _gcl_edge_kernel(*refs, n_nodes, edge_dim, stream_pre, out_nh):
    if stream_pre:
        (edges_ref, pre_ref, w2_ref, b2_ref, watt_ref, batt_ref, out_ref) = refs
    else:
        (edges_ref, hab_ref, w1c_ref, b1_ref, w2_ref, b2_ref,
         watt_ref, batt_ref, out_ref) = refs

    @pl.when(pl.program_id(1) == 0)
    def _():
        out_ref[...] = jnp.zeros_like(out_ref)

    mm_dtype = w2_ref.dtype
    edges = edges_ref[...]                              # (TE, PW) f32
    row = edges[:, 0:1].astype(jnp.int32)
    emask = edges[:, 2:3]

    if stream_pre:
        oh_row = _onehot_row(row, n_nodes, mm_dtype)
        pre = pre_ref[...].astype(jnp.float32)
    else:
        col = edges[:, 1:2].astype(jnp.int32)
        oh2, oh_row = _onehots_gather(row, col, n_nodes, mm_dtype)
        pre = jnp.dot(oh2, hab_ref[...], preferred_element_type=jnp.float32)
        eattr = edges[:, 3:3 + edge_dim]
        for j in range(edge_dim):                       # edge_dim=2: VPU outer-product
            pre = pre + eattr[:, j:j + 1] * w1c_ref[j:j + 1, :]
        pre = pre + b1_ref[...]

    m = _silu(pre)                                      # (TE, H) f32
    m = jnp.dot(m.astype(mm_dtype), w2_ref[...],
                preferred_element_type=jnp.float32) + b2_ref[...]
    m = _silu(m)

    # attention Linear(H -> 1) + sigmoid as a VPU multiply + lane reduction
    att = jax.nn.sigmoid(jnp.sum(m * watt_ref[...], axis=-1, keepdims=True)
                         + batt_ref[...])               # (TE, 1)
    msg = (m * att * emask).astype(mm_dtype)            # (TE, H)

    # unsorted_segment_sum: one-hot contraction over the edge axis in mm_dtype
    if out_nh:   # (N, H) accumulator (H >= 128)
        out_ref[...] += lax.dot_general(oh_row, msg, (((0,), (0,)), ((), ())),
                                        preferred_element_type=jnp.float32)
    else:        # (H, N) lane-dense accumulator (H < 128)
        out_ref[...] += lax.dot_general(msg, oh_row, (((0,), (0,)), ((), ())),
                                        preferred_element_type=jnp.float32)


# ---------------------------------------------------------------------------
# E3CoordLayer edge kernel: tanh gate * coord_diff + lane-dense segment-sum
# ---------------------------------------------------------------------------

def _coord_edge_kernel(*refs, n_nodes, edge_dim, stream_pre, coords_range):
    if stream_pre:
        (edges_ref, pre_ref, w2_ref, b2_ref, w3_ref, out_ref) = refs
    else:
        (edges_ref, hab_ref, w1c_ref, b1_ref, w2_ref, b2_ref, w3_ref,
         out_ref) = refs

    @pl.when(pl.program_id(1) == 0)
    def _():
        out_ref[...] = jnp.zeros_like(out_ref)

    mm_dtype = w2_ref.dtype
    edges = edges_ref[...]                              # (TE, PW) f32
    te, pw = edges.shape
    row = edges[:, 0:1].astype(jnp.int32)

    if stream_pre:
        oh_row = _onehot_row(row, n_nodes, mm_dtype)
        pre = pre_ref[...].astype(jnp.float32)
    else:
        col = edges[:, 1:2].astype(jnp.int32)
        oh2, oh_row = _onehots_gather(row, col, n_nodes, mm_dtype)
        pre = jnp.dot(oh2, hab_ref[...], preferred_element_type=jnp.float32)
        eattr = edges[:, 3:3 + edge_dim]
        for j in range(edge_dim):
            pre = pre + eattr[:, j:j + 1] * w1c_ref[j:j + 1, :]
        pre = pre + b1_ref[...]

    m = _silu(pre)
    m = jnp.dot(m.astype(mm_dtype), w2_ref[...],
                preferred_element_type=jnp.float32) + b2_ref[...]
    m = _silu(m)                                        # (TE, H) f32

    # gate Linear(H -> 1, no bias) as a VPU multiply + lane reduction
    gate = jnp.sum(m * w3_ref[...], axis=-1, keepdims=True)        # (TE, 1)
    # keep only the coord_diff columns of the packed edge stream
    cd_sel = (lax.broadcasted_iota(jnp.int32, (1, pw), 1)
              >= 3 + edge_dim).astype(jnp.float32)
    trans = (edges * cd_sel * (jnp.tanh(gate) * coords_range)).astype(mm_dtype)

    # lane-dense scatter: packed columns on sublanes, nodes on lanes -> (PW, N)
    out_ref[...] += lax.dot_general(trans, oh_row, (((0,), (0,)), ((), ())),
                                    preferred_element_type=jnp.float32)


# ---------------------------------------------------------------------------
# wrappers
# ---------------------------------------------------------------------------

def gcl_forward(h, packed, edge_index, edge_attr, flags, p, *, n_split,
                tiles_per_split, tile_e, mm_dtype, stream_pre, out_nh,
                vmem_limit):
    n, hd = h.shape
    edge_dim = edge_attr.shape[1]
    pw = packed.shape[1]
    e_pad = packed.shape[0]

    kernel = functools.partial(_gcl_edge_kernel, n_nodes=n, edge_dim=edge_dim,
                               stream_pre=stream_pre, out_nh=out_nh)
    edge_spec = pl.BlockSpec((tile_e, pw),
                             lambda c, e: (c * tiles_per_split + e, 0))
    res = lambda shape: pl.BlockSpec(shape, lambda c, e: (0,) * len(shape))

    w1 = p["msg_w1"]
    if stream_pre:
        pre_edge = _pre_edge_activation(h, edge_index, edge_attr, w1,
                                        p["msg_b1"], e_pad, mm_dtype)
        ins = (packed, pre_edge, p["msg_w2"].astype(mm_dtype), p["msg_b2"],
               p["att_w"].T, p["att_b"])
        in_specs = [edge_spec,
                    pl.BlockSpec((tile_e, hd),
                                 lambda c, e: (c * tiles_per_split + e, 0)),
                    res((hd, hd)), res((1, hd)), res((1, hd)), res((1, 1))]
    else:
        hab = jnp.concatenate([h @ w1[:hd], h @ w1[hd:2 * hd]], axis=0)  # (2N,H)
        ins = (packed, hab.astype(mm_dtype), w1[2 * hd:].astype(jnp.float32),
               p["msg_b1"], p["msg_w2"].astype(mm_dtype), p["msg_b2"],
               p["att_w"].T, p["att_b"])
        in_specs = [edge_spec, res((2 * n, hd)), res((edge_dim, hd)),
                    res((1, hd)), res((hd, hd)), res((1, hd)),
                    res((1, hd)), res((1, 1))]

    out_shape = (n_split, n, hd) if out_nh else (n_split, hd, n)
    out_spec = pl.BlockSpec((None,) + out_shape[1:], lambda c, e: (c, 0, 0))

    partials = pl.pallas_call(
        kernel,
        out_shape=jax.ShapeDtypeStruct(out_shape, jnp.float32),
        grid_spec=pltpu.PrefetchScalarGridSpec(
            num_scalar_prefetch=0,
            grid=(n_split, tiles_per_split),
            in_specs=in_specs,
            out_specs=out_spec),
        compiler_params=pltpu.CompilerParams(
            dimension_semantics=("parallel", "arbitrary"),
            vmem_limit_bytes=vmem_limit),
    )(*ins)

    agg = jnp.sum(partials, axis=0)
    if not out_nh:
        agg = agg.T                                    # (N, H)
    # TODO(synk): the O(N) node MLP stays in XLA; fuse into Pallas only if N is
    # large enough for it to matter.
    z = jnp.concatenate([h, agg], axis=1) @ p["node_w1"] + p["node_b1"]
    z = z * jax.nn.sigmoid(z)
    z = z @ p["node_w2"] + p["node_b2"]
    return (h + z) * flags


def e3_coord_forward(h, x, packed, edge_index, edge_attr, flags, p,
                     coords_range, *, n_split, tiles_per_split, tile_e,
                     mm_dtype, stream_pre, vmem_limit):
    n, hd = h.shape
    edge_dim = edge_attr.shape[1]
    pw = packed.shape[1]
    e_pad = packed.shape[0]

    kernel = functools.partial(_coord_edge_kernel, n_nodes=n, edge_dim=edge_dim,
                               stream_pre=stream_pre,
                               coords_range=float(coords_range))
    edge_spec = pl.BlockSpec((tile_e, pw),
                             lambda c, e: (c * tiles_per_split + e, 0))
    res = lambda shape: pl.BlockSpec(shape, lambda c, e: (0,) * len(shape))

    w1 = p["coord_w1"]
    if stream_pre:
        pre_edge = _pre_edge_activation(h, edge_index, edge_attr, w1,
                                        p["coord_b1"], e_pad, mm_dtype)
        ins = (packed, pre_edge, p["coord_w2"].astype(mm_dtype), p["coord_b2"],
               p["coord_w3"].T)
        in_specs = [edge_spec,
                    pl.BlockSpec((tile_e, hd),
                                 lambda c, e: (c * tiles_per_split + e, 0)),
                    res((hd, hd)), res((1, hd)), res((1, hd))]
    else:
        hab = jnp.concatenate([h @ w1[:hd], h @ w1[hd:2 * hd]], axis=0)  # (2N,H)
        ins = (packed, hab.astype(mm_dtype), w1[2 * hd:].astype(jnp.float32),
               p["coord_b1"], p["coord_w2"].astype(mm_dtype), p["coord_b2"],
               p["coord_w3"].T)
        in_specs = [edge_spec, res((2 * n, hd)), res((edge_dim, hd)),
                    res((1, hd)), res((hd, hd)), res((1, hd)), res((1, hd))]

    out_spec = pl.BlockSpec((None, pw, n), lambda c, e: (c, 0, 0))
    partials = pl.pallas_call(
        kernel,
        out_shape=jax.ShapeDtypeStruct((n_split, pw, n), jnp.float32),
        grid_spec=pltpu.PrefetchScalarGridSpec(
            num_scalar_prefetch=0,
            grid=(n_split, tiles_per_split),
            in_specs=in_specs,
            out_specs=out_spec),
        compiler_params=pltpu.CompilerParams(
            dimension_semantics=("parallel", "arbitrary"),
            vmem_limit_bytes=vmem_limit),
    )(*ins)

    cd0 = 3 + edge_dim
    agg = jnp.sum(partials, axis=0)[cd0:cd0 + 3].T                 # (N, 3)
    # NOTE: `tanns = trans * edge_mask` is dead code in the PyTorch module, so
    # edge_mask is intentionally not applied to the coordinate aggregation.
    return (x + agg) * flags


def e3_block_forward(h, x, edge_index, d, flags, edge_mask, params, coords_range,
                     *, tile_e=256, mm_dtype=jnp.bfloat16, n_split=None,
                     stream_pre=None, gcl_out_nh=None):
    n, hd = h.shape
    row, col = edge_index[0], edge_index[1]
    # coord2diff glue: O(E) with a handful of flops/edge -> XLA on purpose
    coord_diff = x[row] - x[col]
    radial = jnp.sum(coord_diff ** 2, axis=1, keepdims=True)
    coord_diff = coord_diff / (jnp.sqrt(radial + 1e-8) + 1.0)
    edge_attr = jnp.concatenate([radial, d], axis=1)               # (E, 2)

    if n_split is None:
        n_split = _default_n_split()                  # 2 only on v7x (2 TCs)
    if stream_pre is None:
        # in-kernel one-hot gather ~4*N*H MXU flops/edge vs ~2*H streamed
        # bytes/edge; crossover N ~ 120 (v5e) / 340 (v6e) / 155 (v7x)
        stream_pre = n > 256
    if gcl_out_nh is None:
        gcl_out_nh = hd >= 128                        # lane-dense (H,N) if H<128
    tile_e = _clamp_tile_e(tile_e, n, stream_pre)

    # packed per-edge stream built once (hoisted out of the GCL layer loop)
    packed, tps = _pack_edges(edge_index, edge_attr, edge_mask, coord_diff,
                              n_split, tile_e)
    vmem_limit = _vmem_limit_bytes(n, hd, packed.shape[1], tile_e, mm_dtype,
                                   stream_pre)

    for p in params["gcl"]:
        h = gcl_forward(h, packed, edge_index, edge_attr, flags, p,
                        n_split=n_split, tiles_per_split=tps, tile_e=tile_e,
                        mm_dtype=mm_dtype, stream_pre=stream_pre,
                        out_nh=gcl_out_nh, vmem_limit=vmem_limit)
    x = e3_coord_forward(h, x, packed, edge_index, edge_attr, flags,
                         params["coord"], coords_range, n_split=n_split,
                         tiles_per_split=tps, tile_e=tile_e, mm_dtype=mm_dtype,
                         stream_pre=stream_pre, vmem_limit=vmem_limit)
    return h, x


# ---------------------------------------------------------------------------
# pure-JAX reference (mirrors the PyTorch module, all f32)
# ---------------------------------------------------------------------------

def _reference_e3_block(h, x, edge_index, d, flags, edge_mask, params,
                        coords_range):
    row, col = edge_index[0], edge_index[1]
    n = h.shape[0]
    coord_diff = x[row] - x[col]
    radial = jnp.sum(coord_diff ** 2, axis=1, keepdims=True)
    coord_diff = coord_diff / (jnp.sqrt(radial + 1e-8) + 1.0)
    edge_attr = jnp.concatenate([radial, d], axis=1)

    for p in params["gcl"]:
        msg = jnp.concatenate([h[row], h[col], edge_attr], axis=1)
        m = msg @ p["msg_w1"] + p["msg_b1"]
        m = m * jax.nn.sigmoid(m)
        m = m @ p["msg_w2"] + p["msg_b2"]
        m = m * jax.nn.sigmoid(m)
        att = jax.nn.sigmoid(m @ p["att_w"] + p["att_b"])
        msg_g = m * att * edge_mask
        agg = jnp.zeros((n, m.shape[1]), jnp.float32).at[row].add(msg_g)
        z = jnp.concatenate([h, agg], axis=1) @ p["node_w1"] + p["node_b1"]
        z = z * jax.nn.sigmoid(z)
        z = z @ p["node_w2"] + p["node_b2"]
        h = (h + z) * flags

    cp = params["coord"]
    msg = jnp.concatenate([h[row], h[col], edge_attr], axis=1)
    m = msg @ cp["coord_w1"] + cp["coord_b1"]
    m = m * jax.nn.sigmoid(m)
    m = m @ cp["coord_w2"] + cp["coord_b2"]
    m = m * jax.nn.sigmoid(m)
    gate = m @ cp["coord_w3"]
    trans = coord_diff * jnp.tanh(gate) * coords_range
    agg = jnp.zeros((n, 3), jnp.float32).at[row].add(trans)
    return h, (x + agg) * flags


# ---------------------------------------------------------------------------
# demo / self-test
# ---------------------------------------------------------------------------

if __name__ == "__main__":
    key = jax.random.PRNGKey(0)
    N, H, EDGE_DIM = 16, 32, 2
    COORDS_RANGE = 3.0

    # fully-connected graph without self loops -> E = 240 (exercises padding,
    # the edge split, and multi-tile accumulation at tile_e = 64)
    rows = jnp.repeat(jnp.arange(N), N)
    cols = jnp.tile(jnp.arange(N), N)
    keep = rows != cols
    edge_index = jnp.stack([rows[keep], cols[keep]], axis=0).astype(jnp.int32)
    E = edge_index.shape[1]

    ks = jax.random.split(key, 8)
    h0 = jax.random.normal(ks[0], (N, H), jnp.float32)
    x0 = jax.random.normal(ks[1], (N, 3), jnp.float32)
    d = jax.random.uniform(ks[2], (E, 1), jnp.float32)
    flags = (jax.random.uniform(ks[3], (N, 1)) > 0.2).astype(jnp.float32)
    edge_mask = flags[edge_index[0]] * flags[edge_index[1]]        # (E, 1)

    def unif(k, shape, scale):
        return jax.random.uniform(k, shape, jnp.float32, -scale, scale)

    def gcl_params(k):
        kk = jax.random.split(k, 10)
        f1 = 2 * H + EDGE_DIM
        return {
            "msg_w1": unif(kk[0], (f1, H), f1 ** -0.5),
            "msg_b1": unif(kk[1], (1, H), f1 ** -0.5),
            "msg_w2": unif(kk[2], (H, H), H ** -0.5),
            "msg_b2": unif(kk[3], (1, H), H ** -0.5),
            "att_w": unif(kk[4], (H, 1), H ** -0.5),
            "att_b": unif(kk[5], (1, 1), H ** -0.5),
            "node_w1": unif(kk[6], (2 * H, H), (2 * H) ** -0.5),
            "node_b1": unif(kk[7], (1, H), (2 * H) ** -0.5),
            "node_w2": unif(kk[8], (H, H), H ** -0.5),
            "node_b2": unif(kk[9], (1, H), H ** -0.5),
        }

    def coord_params(k):
        kk = jax.random.split(k, 5)
        f1 = 2 * H + EDGE_DIM
        return {
            "coord_w1": unif(kk[0], (f1, H), f1 ** -0.5),
            "coord_b1": unif(kk[1], (1, H), f1 ** -0.5),
            "coord_w2": unif(kk[2], (H, H), H ** -0.5),
            "coord_b2": unif(kk[3], (1, H), H ** -0.5),
            # matches torch.nn.init.xavier_uniform_(gain=0.001), bias-free
            "coord_w3": unif(kk[4], (H, 1), 0.001 * (6.0 / (H + 1)) ** 0.5),
        }

    params = {"gcl": [gcl_params(ks[4]), gcl_params(ks[5])],
              "coord": coord_params(ks[6])}

    h_ref, x_ref = _reference_e3_block(h0, x0, edge_index, d, flags, edge_mask,
                                       params, COORDS_RANGE)

    # 1) f32 matmuls, in-kernel gather, 2-way split, lane-dense (H,N) GCL out.
    run_a = jax.jit(functools.partial(
        e3_block_forward, coords_range=COORDS_RANGE, tile_e=64,
        mm_dtype=jnp.float32, n_split=2, stream_pre=False, gcl_out_nh=False))
    h_a, x_a = jax.block_until_ready(
        run_a(h0, x0, edge_index, d, flags, edge_mask, params))
    assert jnp.allclose(h_a, h_ref, atol=1e-3, rtol=1e-3)
    assert jnp.allclose(x_a, x_ref, atol=1e-3, rtol=1e-3)

    # 2) f32, streamed pre-gathered first layer, single split, (N,H) GCL out.
    run_b = jax.jit(functools.partial(
        e3_block_forward, coords_range=COORDS_RANGE, tile_e=64,
        mm_dtype=jnp.float32, n_split=1, stream_pre=True, gcl_out_nh=True))
    h_b, x_b = jax.block_until_ready(
        run_b(h0, x0, edge_index, d, flags, edge_mask, params))
    assert jnp.allclose(h_b, h_ref, atol=1e-3, rtol=1e-3)
    assert jnp.allclose(x_b, x_ref, atol=1e-3, rtol=1e-3)

    # 3) production default: bf16 matmul operands, auto config. Loose check.
    run_c = jax.jit(functools.partial(
        e3_block_forward, coords_range=COORDS_RANGE, tile_e=64,
        mm_dtype=jnp.bfloat16))
    h_c, x_c = jax.block_until_ready(
        run_c(h0, x0, edge_index, d, flags, edge_mask, params))
    rel = lambda a, b: float(jnp.linalg.norm(a - b) / (jnp.linalg.norm(b) + 1e-9))
    assert rel(h_c, h_ref) < 5e-2
    assert rel(x_c, x_ref) < 5e-2

    print("KERNEL_OK")
</pallas_src>

<mosaic_0001>
module attributes {stable_mosaic.version = 11 : i64} {
  func.func @_coord_edge_kernel(%arg0: i32, %arg1: i32, %arg2: memref<64x8xf32, #tpu.memory_space<vmem>>, %arg3: memref<32x32xf32, #tpu.memory_space<vmem>>, %arg4: memref<2x32xf32, #tpu.memory_space<vmem>>, %arg5: memref<1x32xf32, #tpu.memory_space<vmem>>, %arg6: memref<32x32xf32, #tpu.memory_space<vmem>>, %arg7: memref<1x32xf32, #tpu.memory_space<vmem>>, %arg8: memref<1x32xf32, #tpu.memory_space<vmem>>, %arg9: memref<1x8x16xf32, #tpu.memory_space<vmem>>) attributes {dimension_semantics = [#tpu.dimension_semantics<parallel>, #tpu.dimension_semantics<arbitrary>], iteration_bounds = array<i64: 2, 2>, scalar_prefetch = 0 : i64, scratch_operands = 0 : i64, tpu.core_type = #tpu.core_type<tc>, window_params = [{transform_indices = @transform_0, window_bounds = array<i64: 64, 8>}, {pipeline_mode = #tpu.pipeline_mode<synchronous>, transform_indices = @transform_1, window_bounds = array<i64: 32, 32>}, {pipeline_mode = #tpu.pipeline_mode<synchronous>, transform_indices = @transform_2, window_bounds = array<i64: 2, 32>}, {pipeline_mode = #tpu.pipeline_mode<synchronous>, transform_indices = @transform_3, window_bounds = array<i64: 1, 32>}, {pipeline_mode = #tpu.pipeline_mode<synchronous>, transform_indices = @transform_4, window_bounds = array<i64: 32, 32>}, {pipeline_mode = #tpu.pipeline_mode<synchronous>, transform_indices = @transform_5, window_bounds = array<i64: 1, 32>}, {pipeline_mode = #tpu.pipeline_mode<synchronous>, transform_indices = @transform_6, window_bounds = array<i64: 1, 32>}, {transform_indices = @transform_7, window_bounds = array<i64: 1, 8, 16>}]} {
    %c0_i32 = arith.constant 0 : i32
    %0 = arith.cmpi eq, %arg1, %c0_i32 : i32
    %1 = arith.extui %0 : i1 to i32
    %c0_i32_0 = arith.constant 0 : i32
    %2 = arith.cmpi ne, %1, %c0_i32_0 : i32
    scf.if %2 {
      %cst_27 = arith.constant 0.000000e+00 : f32
      %78 = vector.broadcast %cst_27 : f32 to vector<8x16xf32>
      %c0_28 = arith.constant 0 : index
      %c0_29 = arith.constant 0 : index
      %c0_30 = arith.constant 0 : index
      %79 = vector.load %arg9[%c0_28, %c0_29, %c0_30] : memref<1x8x16xf32, #tpu.memory_space<vmem>>, vector<1x8x16xf32>
      %80 = vector.shape_cast %79 : vector<1x8x16xf32> to vector<8x16xf32>
      %81 = vector.shape_cast %78 : vector<8x16xf32> to vector<1x8x16xf32>
      tpu.vector_store %arg9[%c0_28, %c0_29, %c0_30], %81 {strides = array<i32>} : memref<1x8x16xf32, #tpu.memory_space<vmem>>, vector<1x8x16xf32>,
    } else {
    }
    %c0 = arith.constant 0 : index
    %c0_1 = arith.constant 0 : index
    %3 = vector.load %arg2[%c0, %c0_1] : memref<64x8xf32, #tpu.memory_space<vmem>>, vector<64x8xf32>
    %4 = vector.extract_strided_slice %3 {offsets = [0, 0], sizes = [64, 1], strides = [1, 1]} : vector<64x8xf32> to vector<64x1xf32>
    %5 = arith.fptosi %4 : vector<64x1xf32> to vector<64x1xi32>
    %6 = vector.extract_strided_slice %3 {offsets = [0, 1], sizes = [64, 1], strides = [1, 1]} : vector<64x8xf32> to vector<64x1xf32>
    %7 = arith.fptosi %6 : vector<64x1xf32> to vector<64x1xi32>
    %8 = tpu.iota {dimensions = array<i32: 1>} : vector<64x32xi32>
    %9 = vector.broadcast %5 : vector<64x1xi32> to vector<64x32xi32>
    %10 = arith.cmpi eq, %8, %9 : vector<64x32xi32>
    %c16_i32 = arith.constant 16 : i32
    %11 = vector.broadcast %c16_i32 : i32 to vector<64x1xi32>
    %12 = arith.addi %7, %11 : vector<64x1xi32>
    %13 = vector.broadcast %12 : vector<64x1xi32> to vector<64x32xi32>
    %14 = arith.cmpi eq, %8, %13 : vector<64x32xi32>
    %15 = arith.ori %10, %14 : vector<64x32xi1>
    %16 = arith.extui %15 : vector<64x32xi1> to vector<64x32xi32>
    %17 = arith.sitofp %16 : vector<64x32xi32> to vector<64x32xf32>
    %18 = vector.extract_strided_slice %17 {offsets = [0, 0], sizes = [64, 16], strides = [1, 1]} : vector<64x32xf32> to vector<64x16xf32>
    %c0_2 = arith.constant 0 : index
    %c0_3 = arith.constant 0 : index
    %19 = vector.load %arg3[%c0_2, %c0_3] : memref<32x32xf32, #tpu.memory_space<vmem>>, vector<32x32xf32>
    %cst = arith.constant dense<0.000000e+00> : vector<64x32xf32>
    %20 = tpu.matmul %17, %19, %cst {dimension_numbers = #tpu.dot_dimension_numbers<[1], [0], [0], [1], [0, 0, 1, 1], [], []>} : vector<64x32xf32>, vector<32x32xf32>, vector<64x32xf32> -> vector<64x32xf32>
    %21 = vector.extract_strided_slice %3 {offsets = [0, 3], sizes = [64, 2], strides = [1, 1]} : vector<64x8xf32> to vector<64x2xf32>
    %22 = vector.extract_strided_slice %21 {offsets = [0, 0], sizes = [64, 1], strides = [1, 1]} : vector<64x2xf32> to vector<64x1xf32>
    %c0_4 = arith.constant 0 : index
    %c0_5 = arith.constant 0 : index
    %23 = vector.load %arg4[%c0_4, %c0_5] : memref<2x32xf32, #tpu.memory_space<vmem>>, vector<1x32xf32>
    %24 = vector.broadcast %22 : vector<64x1xf32> to vector<64x32xf32>
    %25 = vector.broadcast %23 : vector<1x32xf32> to vector<64x32xf32>
    %26 = arith.mulf %24, %25 : vector<64x32xf32>
    %27 = arith.addf %20, %26 : vector<64x32xf32>
    %28 = vector.extract_strided_slice %21 {offsets = [0, 1], sizes = [64, 1], strides = [1, 1]} : vector<64x2xf32> to vector<64x1xf32>
    %c1 = arith.constant 1 : index
    %c0_6 = arith.constant 0 : index
    %29 = vector.load %arg4[%c1, %c0_6] : memref<2x32xf32, #tpu.memory_space<vmem>>, vector<1x32xf32>
    %30 = vector.broadcast %28 : vector<64x1xf32> to vector<64x32xf32>
    %31 = vector.broadcast %29 : vector<1x32xf32> to vector<64x32xf32>
    %32 = arith.mulf %30, %31 : vector<64x32xf32>
    %33 = arith.addf %27, %32 : vector<64x32xf32>
    %c0_7 = arith.constant 0 : index
    %c0_8 = arith.constant 0 : index
    %34 = vector.load %arg5[%c0_7, %c0_8] : memref<1x32xf32, #tpu.memory_space<vmem>>, vector<1x32xf32>
    %35 = vector.broadcast %34 : vector<1x32xf32> to vector<64x32xf32>
    %36 = arith.addf %33, %35 : vector<64x32xf32>
    %37 = arith.negf %36 : vector<64x32xf32>
    %38 = math.exp %37 : vector<64x32xf32>
    %cst_9 = arith.constant 1.000000e+00 : f32
    %39 = vector.broadcast %cst_9 : f32 to vector<64x32xf32>
    %40 = arith.addf %39, %38 : vector<64x32xf32>
    %41 = arith.divf %39, %40 : vector<64x32xf32>
    %42 = arith.mulf %36, %41 : vector<64x32xf32>
    %c0_10 = arith.constant 0 : index
    %c0_11 = arith.constant 0 : index
    %43 = vector.load %arg6[%c0_10, %c0_11] : memref<32x32xf32, #tpu.memory_space<vmem>>, vector<32x32xf32>
    %cst_12 = arith.constant dense<0.000000e+00> : vector<64x32xf32>
    %44 = tpu.matmul %42, %43, %cst_12 {dimension_numbers = #tpu.dot_dimension_numbers<[1], [0], [0], [1], [0, 0, 1, 1], [], []>} : vector<64x32xf32>, vector<32x32xf32>, vector<64x32xf32> -> vector<64x32xf32>
    %c0_13 = arith.constant 0 : index
    %c0_14 = arith.constant 0 : index
    %45 = vector.load %arg7[%c0_13, %c0_14] : memref<1x32xf32, #tpu.memory_space<vmem>>, vector<1x32xf32>
    %46 = vector.broadcast %45 : vector<1x32xf32> to vector<64x32xf32>
    %47 = arith.addf %44, %46 : vector<64x32xf32>
    %48 = arith.negf %47 : vector<64x32xf32>
    %49 = math.exp %48 : vector<64x32xf32>
    %cst_15 = arith.constant 1.000000e+00 : f32
    %50 = vector.broadcast %cst_15 : f32 to vector<64x32xf32>
    %51 = arith.addf %50, %49 : vector<64x32xf32>
    %52 = arith.divf %50, %51 : vector<64x32xf32>
    %53 = arith.mulf %47, %52 : vector<64x32xf32>
    %c0_16 = arith.constant 0 : index
    %c0_17 = arith.constant 0 : index
    %54 = vector.load %arg8[%c0_16, %c0_17] : memref<1x32xf32, #tpu.memory_space<vmem>>, vector<1x32xf32>
    %55 = vector.broadcast %54 : vector<1x32xf32> to vector<64x32xf32>
    %56 = arith.mulf %53, %55 : vector<64x32xf32>
    %cst_18 = arith.constant dense<0.000000e+00> : vector<64xf32>
    %57 = vector.multi_reduction <add>, %56, %cst_18 [1] : vector<64x32xf32> to vector<64xf32>
    %58 = vector.shape_cast %57 : vector<64xf32> to vector<64x1xf32>
    %59 = tpu.iota {dimensions = array<i32: 1>} : vector<1x8xi32>
    %c5_i32 = arith.constant 5 : i32
    %60 = vector.broadcast %c5_i32 : i32 to vector<1x8xi32>
    %61 = arith.cmpi sge, %59, %60 : vector<1x8xi32>
    %62 = arith.extui %61 : vector<1x8xi1> to vector<1x8xi32>
    %63 = arith.sitofp %62 : vector<1x8xi32> to vector<1x8xf32>
    %64 = vector.broadcast %63 : vector<1x8xf32> to vector<64x8xf32>
    %65 = arith.mulf %3, %64 : vector<64x8xf32>
    %66 = math.tanh %58 : vector<64x1xf32>
    %cst_19 = arith.constant 3.000000e+00 : f32
    %67 = vector.broadcast %cst_19 : f32 to vector<64x1xf32>
    %68 = arith.mulf %66, %67 : vector<64x1xf32>
    %69 = vector.broadcast %68 : vector<64x1xf32> to vector<64x8xf32>
    %70 = arith.mulf %65, %69 : vector<64x8xf32>
    %c0_20 = arith.constant 0 : index
    %c0_21 = arith.constant 0 : index
    %c0_22 = arith.constant 0 : index
    %71 = vector.load %arg9[%c0_20, %c0_21, %c0_22] : memref<1x8x16xf32, #tpu.memory_space<vmem>>, vector<1x8x16xf32>
    %72 = vector.shape_cast %71 : vector<1x8x16xf32> to vector<8x16xf32>
    %cst_23 = arith.constant dense<0.000000e+00> : vector<8x16xf32>
    %73 = tpu.matmul %70, %18, %cst_23 {dimension_numbers = #tpu.dot_dimension_numbers<[0], [0], [1], [1], [0, 1, 1, 1], [], []>} : vector<64x8xf32>, vector<64x16xf32>, vector<8x16xf32> -> vector<8x16xf32>
    %74 = arith.addf %72, %73 : vector<8x16xf32>
    %c0_24 = arith.constant 0 : index
    %c0_25 = arith.constant 0 : index
    %c0_26 = arith.constant 0 : index
    %75 = vector.load %arg9[%c0_24, %c0_25, %c0_26] : memref<1x8x16xf32, #tpu.memory_space<vmem>>, vector<1x8x16xf32>
    %76 = vector.shape_cast %75 : vector<1x8x16xf32> to vector<8x16xf32>
    %77 = vector.shape_cast %74 : vector<8x16xf32> to vector<1x8x16xf32>
    tpu.vector_store %arg9[%c0_24, %c0_25, %c0_26], %77 {strides = array<i32>} : memref<1x8x16xf32, #tpu.memory_space<vmem>>, vector<1x8x16xf32>,
    return
  }
  func.func @transform_0(%arg0: i32, %arg1: i32) -> (i32, i32) {
    %c2_i32 = arith.constant 2 : i32
    %0 = arith.muli %arg0, %c2_i32 : i32
    %1 = arith.addi %0, %arg1 : i32
    %c0_i32 = arith.constant 0 : i32
    %c0_i32_0 = arith.constant 0 : i32
    return %1, %c0_i32 : i32, i32
  }
  func.func @transform_1(%arg0: i32, %arg1: i32) -> (i32, i32) {
    %c0_i32 = arith.constant 0 : i32
    %c0_i32_0 = arith.constant 0 : i32
    %c0_i32_1 = arith.constant 0 : i32
    return %c0_i32, %c0_i32_0 : i32, i32
  }
  func.func @transform_2(%arg0: i32, %arg1: i32) -> (i32, i32) {
    %c0_i32 = arith.constant 0 : i32
    %c0_i32_0 = arith.constant 0 : i32
    %c0_i32_1 = arith.constant 0 : i32
    return %c0_i32, %c0_i32_0 : i32, i32
  }
  func.func @transform_3(%arg0: i32, %arg1: i32) -> (i32, i32) {
    %c0_i32 = arith.constant 0 : i32
    %c0_i32_0 = arith.constant 0 : i32
    %c0_i32_1 = arith.constant 0 : i32
    return %c0_i32, %c0_i32_0 : i32, i32
  }
  func.func @transform_4(%arg0: i32, %arg1: i32) -> (i32, i32) {
    %c0_i32 = arith.constant 0 : i32
    %c0_i32_0 = arith.constant 0 : i32
    %c0_i32_1 = arith.constant 0 : i32
    return %c0_i32, %c0_i32_0 : i32, i32
  }
  func.func @transform_5(%arg0: i32, %arg1: i32) -> (i32, i32) {
    %c0_i32 = arith.constant 0 : i32
    %c0_i32_0 = arith.constant 0 : i32
    %c0_i32_1 = arith.constant 0 : i32
    return %c0_i32, %c0_i32_0 : i32, i32
  }
  func.func @transform_6(%arg0: i32, %arg1: i32) -> (i32, i32) {
    %c0_i32 = arith.constant 0 : i32
    %c0_i32_0 = arith.constant 0 : i32
    %c0_i32_1 = arith.constant 0 : i32
    return %c0_i32, %c0_i32_0 : i32, i32
  }
  func.func @transform_7(%arg0: i32, %arg1: i32) -> (i32, i32, i32) {
    %c0_i32 = arith.constant 0 : i32
    %c0_i32_0 = arith.constant 0 : i32
    %c0_i32_1 = arith.constant 0 : i32
    return %arg0, %c0_i32, %c0_i32_0 : i32, i32, i32
  }
}

module attributes {stable_mosaic.version = 11 : i64} {
  func.func @_gcl_edge_kernel(%arg0: i32, %arg1: i32, %arg2: memref<64x8xf32, #tpu.memory_space<vmem>>, %arg3: memref<32x32xf32, #tpu.memory_space<vmem>>, %arg4: memref<2x32xf32, #tpu.memory_space<vmem>>, %arg5: memref<1x32xf32, #tpu.memory_space<vmem>>, %arg6: memref<32x32xf32, #tpu.memory_space<vmem>>, %arg7: memref<1x32xf32, #tpu.memory_space<vmem>>, %arg8: memref<1x32xf32, #tpu.memory_space<vmem>>, %arg9: memref<1x1xf32, #tpu.memory_space<vmem>>, %arg10: memref<1x32x16xf32, #tpu.memory_space<vmem>>) attributes {dimension_semantics = [#tpu.dimension_semantics<parallel>, #tpu.dimension_semantics<arbitrary>], iteration_bounds = array<i64: 2, 2>, scalar_prefetch = 0 : i64, scratch_operands = 0 : i64, tpu.core_type = #tpu.core_type<tc>, window_params = [{transform_indices = @transform_0, window_bounds = array<i64: 64, 8>}, {pipeline_mode = #tpu.pipeline_mode<synchronous>, transform_indices = @transform_1, window_bounds = array<i64: 32, 32>}, {pipeline_mode = #tpu.pipeline_mode<synchronous>, transform_indices = @transform_2, window_bounds = array<i64: 2, 32>}, {pipeline_mode = #tpu.pipeline_mode<synchronous>, transform_indices = @transform_3, window_bounds = array<i64: 1, 32>}, {pipeline_mode = #tpu.pipeline_mode<synchronous>, transform_indices = @transform_4, window_bounds = array<i64: 32, 32>}, {pipeline_mode = #tpu.pipeline_mode<synchronous>, transform_indices = @transform_5, window_bounds = array<i64: 1, 32>}, {pipeline_mode = #tpu.pipeline_mode<synchronous>, transform_indices = @transform_6, window_bounds = array<i64: 1, 32>}, {pipeline_mode = #tpu.pipeline_mode<synchronous>, transform_indices = @transform_7, window_bounds = array<i64: 1, 1>}, {transform_indices = @transform_8, window_bounds = array<i64: 1, 32, 16>}]} {
    %c0_i32 = arith.constant 0 : i32
    %0 = arith.cmpi eq, %arg1, %c0_i32 : i32
    %1 = arith.extui %0 : i1 to i32
    %c0_i32_0 = arith.constant 0 : i32
    %2 = arith.cmpi ne, %1, %c0_i32_0 : i32
    scf.if %2 {
      %cst_29 = arith.constant 0.000000e+00 : f32
      %79 = vector.broadcast %cst_29 : f32 to vector<32x16xf32>
      %c0_30 = arith.constant 0 : index
      %c0_31 = arith.constant 0 : index
      %c0_32 = arith.constant 0 : index
      %80 = vector.load %arg10[%c0_30, %c0_31, %c0_32] : memref<1x32x16xf32, #tpu.memory_space<vmem>>, vector<1x32x16xf32>
      %81 = vector.shape_cast %80 : vector<1x32x16xf32> to vector<32x16xf32>
      %82 = vector.shape_cast %79 : vector<32x16xf32> to vector<1x32x16xf32>
      tpu.vector_store %arg10[%c0_30, %c0_31, %c0_32], %82 {strides = array<i32>} : memref<1x32x16xf32, #tpu.memory_space<vmem>>, vector<1x32x16xf32>,
    } else {
    }
    %c0 = arith.constant 0 : index
    %c0_1 = arith.constant 0 : index
    %3 = vector.load %arg2[%c0, %c0_1] : memref<64x8xf32, #tpu.memory_space<vmem>>, vector<64x8xf32>
    %4 = vector.extract_strided_slice %3 {offsets = [0, 0], sizes = [64, 1], strides = [1, 1]} : vector<64x8xf32> to vector<64x1xf32>
    %5 = arith.fptosi %4 : vector<64x1xf32> to vector<64x1xi32>
    %6 = vector.extract_strided_slice %3 {offsets = [0, 2], sizes = [64, 1], strides = [1, 1]} : vector<64x8xf32> to vector<64x1xf32>
    %7 = vector.extract_strided_slice %3 {offsets = [0, 1], sizes = [64, 1], strides = [1, 1]} : vector<64x8xf32> to vector<64x1xf32>
    %8 = arith.fptosi %7 : vector<64x1xf32> to vector<64x1xi32>
    %9 = tpu.iota {dimensions = array<i32: 1>} : vector<64x32xi32>
    %10 = vector.broadcast %5 : vector<64x1xi32> to vector<64x32xi32>
    %11 = arith.cmpi eq, %9, %10 : vector<64x32xi32>
    %c16_i32 = arith.constant 16 : i32
    %12 = vector.broadcast %c16_i32 : i32 to vector<64x1xi32>
    %13 = arith.addi %8, %12 : vector<64x1xi32>
    %14 = vector.broadcast %13 : vector<64x1xi32> to vector<64x32xi32>
    %15 = arith.cmpi eq, %9, %14 : vector<64x32xi32>
    %16 = arith.ori %11, %15 : vector<64x32xi1>
    %17 = arith.extui %16 : vector<64x32xi1> to vector<64x32xi32>
    %18 = arith.sitofp %17 : vector<64x32xi32> to vector<64x32xf32>
    %19 = vector.extract_strided_slice %18 {offsets = [0, 0], sizes = [64, 16], strides = [1, 1]} : vector<64x32xf32> to vector<64x16xf32>
    %c0_2 = arith.constant 0 : index
    %c0_3 = arith.constant 0 : index
    %20 = vector.load %arg3[%c0_2, %c0_3] : memref<32x32xf32, #tpu.memory_space<vmem>>, vector<32x32xf32>
    %cst = arith.constant dense<0.000000e+00> : vector<64x32xf32>
    %21 = tpu.matmul %18, %20, %cst {dimension_numbers = #tpu.dot_dimension_numbers<[1], [0], [0], [1], [0, 0, 1, 1], [], []>} : vector<64x32xf32>, vector<32x32xf32>, vector<64x32xf32> -> vector<64x32xf32>
    %22 = vector.extract_strided_slice %3 {offsets = [0, 3], sizes = [64, 2], strides = [1, 1]} : vector<64x8xf32> to vector<64x2xf32>
    %23 = vector.extract_strided_slice %22 {offsets = [0, 0], sizes = [64, 1], strides = [1, 1]} : vector<64x2xf32> to vector<64x1xf32>
    %c0_4 = arith.constant 0 : index
    %c0_5 = arith.constant 0 : index
    %24 = vector.load %arg4[%c0_4, %c0_5] : memref<2x32xf32, #tpu.memory_space<vmem>>, vector<1x32xf32>
    %25 = vector.broadcast %23 : vector<64x1xf32> to vector<64x32xf32>
    %26 = vector.broadcast %24 : vector<1x32xf32> to vector<64x32xf32>
    %27 = arith.mulf %25, %26 : vector<64x32xf32>
    %28 = arith.addf %21, %27 : vector<64x32xf32>
    %29 = vector.extract_strided_slice %22 {offsets = [0, 1], sizes = [64, 1], strides = [1, 1]} : vector<64x2xf32> to vector<64x1xf32>
    %c1 = arith.constant 1 : index
    %c0_6 = arith.constant 0 : index
    %30 = vector.load %arg4[%c1, %c0_6] : memref<2x32xf32, #tpu.memory_space<vmem>>, vector<1x32xf32>
    %31 = vector.broadcast %29 : vector<64x1xf32> to vector<64x32xf32>
    %32 = vector.broadcast %30 : vector<1x32xf32> to vector<64x32xf32>
    %33 = arith.mulf %31, %32 : vector<64x32xf32>
    %34 = arith.addf %28, %33 : vector<64x32xf32>
    %c0_7 = arith.constant 0 : index
    %c0_8 = arith.constant 0 : index
    %35 = vector.load %arg5[%c0_7, %c0_8] : memref<1x32xf32, #tpu.memory_space<vmem>>, vector<1x32xf32>
    %36 = vector.broadcast %35 : vector<1x32xf32> to vector<64x32xf32>
    %37 = arith.addf %34, %36 : vector<64x32xf32>
    %38 = arith.negf %37 : vector<64x32xf32>
    %39 = math.exp %38 : vector<64x32xf32>
    %cst_9 = arith.constant 1.000000e+00 : f32
    %40 = vector.broadcast %cst_9 : f32 to vector<64x32xf32>
    %41 = arith.addf %40, %39 : vector<64x32xf32>
    %42 = arith.divf %40, %41 : vector<64x32xf32>
    %43 = arith.mulf %37, %42 : vector<64x32xf32>
    %c0_10 = arith.constant 0 : index
    %c0_11 = arith.constant 0 : index
    %44 = vector.load %arg6[%c0_10, %c0_11] : memref<32x32xf32, #tpu.memory_space<vmem>>, vector<32x32xf32>
    %cst_12 = arith.constant dense<0.000000e+00> : vector<64x32xf32>
    %45 = tpu.matmul %43, %44, %cst_12 {dimension_numbers = #tpu.dot_dimension_numbers<[1], [0], [0], [1], [0, 0, 1, 1], [], []>} : vector<64x32xf32>, vector<32x32xf32>, vector<64x32xf32> -> vector<64x32xf32>
    %c0_13 = arith.constant 0 : index
    %c0_14 = arith.constant 0 : index
    %46 = vector.load %arg7[%c0_13, %c0_14] : memref<1x32xf32, #tpu.memory_space<vmem>>, vector<1x32xf32>
    %47 = vector.broadcast %46 : vector<1x32xf32> to vector<64x32xf32>
    %48 = arith.addf %45, %47 : vector<64x32xf32>
    %49 = arith.negf %48 : vector<64x32xf32>
    %50 = math.exp %49 : vector<64x32xf32>
    %cst_15 = arith.constant 1.000000e+00 : f32
    %51 = vector.broadcast %cst_15 : f32 to vector<64x32xf32>
    %52 = arith.addf %51, %50 : vector<64x32xf32>
    %53 = arith.divf %51, %52 : vector<64x32xf32>
    %54 = arith.mulf %48, %53 : vector<64x32xf32>
    %c0_16 = arith.constant 0 : index
    %c0_17 = arith.constant 0 : index
    %55 = vector.load %arg8[%c0_16, %c0_17] : memref<1x32xf32, #tpu.memory_space<vmem>>, vector<1x32xf32>
    %56 = vector.broadcast %55 : vector<1x32xf32> to vector<64x32xf32>
    %57 = arith.mulf %54, %56 : vector<64x32xf32>
    %cst_18 = arith.constant dense<0.000000e+00> : vector<64xf32>
    %58 = vector.multi_reduction <add>, %57, %cst_18 [1] : vector<64x32xf32> to vector<64xf32>
    %59 = vector.shape_cast %58 : vector<64xf32> to vector<64x1xf32>
    %c0_19 = arith.constant 0 : index
    %c0_20 = arith.constant 0 : index
    %60 = vector.load %arg9[%c0_19, %c0_20] : memref<1x1xf32, #tpu.memory_space<vmem>>, vector<1x1xf32>
    %61 = vector.broadcast %60 : vector<1x1xf32> to vector<64x1xf32>
    %62 = arith.addf %59, %61 : vector<64x1xf32>
    %63 = arith.negf %62 : vector<64x1xf32>
    %64 = math.exp %63 : vector<64x1xf32>
    %cst_21 = arith.constant 1.000000e+00 : f32
    %65 = vector.broadcast %cst_21 : f32 to vector<64x1xf32>
    %66 = arith.addf %65, %64 : vector<64x1xf32>
    %67 = arith.divf %65, %66 : vector<64x1xf32>
    %68 = vector.broadcast %67 : vector<64x1xf32> to vector<64x32xf32>
    %69 = arith.mulf %54, %68 : vector<64x32xf32>
    %70 = vector.broadcast %6 : vector<64x1xf32> to vector<64x32xf32>
    %71 = arith.mulf %69, %70 : vector<64x32xf32>
    %c0_22 = arith.constant 0 : index
    %c0_23 = arith.constant 0 : index
    %c0_24 = arith.constant 0 : index
    %72 = vector.load %arg10[%c0_22, %c0_23, %c0_24] : memref<1x32x16xf32, #tpu.memory_space<vmem>>, vector<1x32x16xf32>
    %73 = vector.shape_cast %72 : vector<1x32x16xf32> to vector<32x16xf32>
    %cst_25 = arith.constant dense<0.000000e+00> : vector<32x16xf32>
    %74 = tpu.matmul %71, %19, %cst_25 {dimension_numbers = #tpu.dot_dimension_numbers<[0], [0], [1], [1], [0, 1, 1, 1], [], []>} : vector<64x32xf32>, vector<64x16xf32>, vector<32x16xf32> -> vector<32x16xf32>
    %75 = arith.addf %73, %74 : vector<32x16xf32>
    %c0_26 = arith.constant 0 : index
    %c0_27 = arith.constant 0 : index
    %c0_28 = arith.constant 0 : index
    %76 = vector.load %arg10[%c0_26, %c0_27, %c0_28] : memref<1x32x16xf32, #tpu.memory_space<vmem>>, vector<1x32x16xf32>
    %77 = vector.shape_cast %76 : vector<1x32x16xf32> to vector<32x16xf32>
    %78 = vector.shape_cast %75 : vector<32x16xf32> to vector<1x32x16xf32>
    tpu.vector_store %arg10[%c0_26, %c0_27, %c0_28], %78 {strides = array<i32>} : memref<1x32x16xf32, #tpu.memory_space<vmem>>, vector<1x32x16xf32>,
    return
  }
  func.func @transform_0(%arg0: i32, %arg1: i32) -> (i32, i32) {
    %c2_i32 = arith.constant 2 : i32
    %0 = arith.muli %arg0, %c2_i32 : i32
    %1 = arith.addi %0, %arg1 : i32
    %c0_i32 = arith.constant 0 : i32
    %c0_i32_0 = arith.constant 0 : i32
    return %1, %c0_i32 : i32, i32
  }
  func.func @transform_1(%arg0: i32, %arg1: i32) -> (i32, i32) {
    %c0_i32 = arith.constant 0 : i32
    %c0_i32_0 = arith.constant 0 : i32
    %c0_i32_1 = arith.constant 0 : i32
    return %c0_i32, %c0_i32_0 : i32, i32
  }
  func.func @transform_2(%arg0: i32, %arg1: i32) -> (i32, i32) {
    %c0_i32 = arith.constant 0 : i32
    %c0_i32_0 = arith.constant 0 : i32
    %c0_i32_1 = arith.constant 0 : i32
    return %c0_i32, %c0_i32_0 : i32, i32
  }
  func.func @transform_3(%arg0: i32, %arg1: i32) -> (i32, i32) {
    %c0_i32 = arith.constant 0 : i32
    %c0_i32_0 = arith.constant 0 : i32
    %c0_i32_1 = arith.constant 0 : i32
    return %c0_i32, %c0_i32_0 : i32, i32
  }
  func.func @transform_4(%arg0: i32, %arg1: i32) -> (i32, i32) {
    %c0_i32 = arith.constant 0 : i32
    %c0_i32_0 = arith.constant 0 : i32
    %c0_i32_1 = arith.constant 0 : i32
    return %c0_i32, %c0_i32_0 : i32, i32
  }
  func.func @transform_5(%arg0: i32, %arg1: i32) -> (i32, i32) {
    %c0_i32 = arith.constant 0 : i32
    %c0_i32_0 = arith.constant 0 : i32
    %c0_i32_1 = arith.constant 0 : i32
    return %c0_i32, %c0_i32_0 : i32, i32
  }
  func.func @transform_6(%arg0: i32, %arg1: i32) -> (i32, i32) {
    %c0_i32 = arith.constant 0 : i32
    %c0_i32_0 = arith.constant 0 : i32
    %c0_i32_1 = arith.constant 0 : i32
    return %c0_i32, %c0_i32_0 : i32, i32
  }
  func.func @transform_7(%arg0: i32, %arg1: i32) -> (i32, i32) {
    %c0_i32 = arith.constant 0 : i32
    %c0_i32_0 = arith.constant 0 : i32
    %c0_i32_1 = arith.constant 0 : i32
    return %c0_i32, %c0_i32_0 : i32, i32
  }
  func.func @transform_8(%arg0: i32, %arg1: i32) -> (i32, i32, i32) {
    %c0_i32 = arith.constant 0 : i32
    %c0_i32_0 = arith.constant 0 : i32
    %c0_i32_1 = arith.constant 0 : i32
    return %arg0, %c0_i32, %c0_i32_0 : i32, i32, i32
  }
}

</mosaic_0001>

<llo_original>
// kernel: e3_block_forward.5
$region0: #{e3_block_forward.5}
  #allocation0 [shape = 'u32[]', space=smem, size = 0x4, offset = 0x4, fixed_abs, tag = 'smem constant byte address 0x4 - core index']
  #allocation1 [shape = 'u32[72,128]{1,0:T(1,128)}', space=vmem, size = 0x9000, scoped, tag = 'internal scratch']
  %s0 = inlined_call_operand.vmem [shape: f32[256,8], index: 0, kind: input, shape index: {}]
  %s1 = inlined_call_operand.vmem [shape: f32[32,32], index: 1, kind: input, shape index: {}]
  %s2 = inlined_call_operand.vmem [shape: f32[2,32], index: 2, kind: input, shape index: {}]
  %s3 = inlined_call_operand.vmem [shape: f32[1,32], index: 3, kind: input, shape index: {}]
  %s4 = inlined_call_operand.vmem [shape: f32[32,32], index: 4, kind: input, shape index: {}]
  %s5 = inlined_call_operand.vmem [shape: f32[1,32], index: 5, kind: input, shape index: {}]
  %s6 = inlined_call_operand.vmem [shape: f32[1,32], index: 6, kind: input, shape index: {}]
  %s7 = inlined_call_operand.vmem [shape: f32[2,8,16], index: 7, kind: output, shape index: {}]
  %s8 = sld [smem:[#allocation0]]
  $region65: #{e3_block_forward.5} parent=0
    _
  %s10 = ssub.s32 1, %s8
  %s11 = scalar_select 0, %s10, %s8
  loop: start=0, step=1, limit=6
  $region2: #{e3_block_forward.5} parent=0 // loop_pre_header
    _
  $region3: #{e3_block_forward.5} parent=0 // loop_header
    %s13 = sphi 0, %s17
    %p14 = scmp.ge.s32.totalorder %s13, 6
    %s20 = sphi 0, %s32
    %s21 = sphi 0, %s28
    %s22 = sphi 0, %s20
    %s23 = sphi 0, %s21
    %s24 = sphi 0, %s22
    %s25 = sphi 0, %s23
    %s39 = sphi 0, %s41
    %s42 = sphi 0, %s39
    %s43 = sphi 0, %s42
    %s59 = sphi 0, %s43
    %s63 = sphi 0, %s63
    %s65 = sphi 0, %s63
    %s66 = sphi 0, %s65
    %s80 = sphi 0, %s66
    %s84 = sphi 0, %s84
    %s86 = sphi 0, %s84
    %s87 = sphi 0, %s86
    %s101 = sphi 0, %s87
    %s105 = sphi 0, %s105
    %s107 = sphi 0, %s105
    %s108 = sphi 0, %s107
    %s122 = sphi 0, %s108
    %s126 = sphi 0, %s126
    %s128 = sphi 0, %s126
    %s129 = sphi 0, %s128
    %s143 = sphi 0, %s129
    %s147 = sphi 0, %s147
    %s149 = sphi 0, %s147
    %s150 = sphi 0, %s149
    %s164 = sphi 0, %s150
    %s168 = sphi 0, %s168
    %s170 = sphi 0, %s168
    %s171 = sphi 0, %s170
    %s185 = sphi 0, %s171
    %s191 = sphi 0, %s193
    %s194 = sphi 0, %s191
    %s195 = sphi 0, %s194
    %s211 = sphi 0, %s195
  $region4: #{e3_block_forward.5} parent=0 // loop_header_branch
    %16 = sbr.rel (%p14) target = $region8
  $region5: #{e3_block_forward.5} parent=0 // loop_body
    %s18 = ssub.s32 %s13, 1
    %s19 = ssub.s32 %s13, 2
    %s26 = sadd.s32 1, %s21
    %p27 = scmp.ge.s32.totalorder %s26, 2
    %s28 = scalar_select %p27, 0, %s26
    %s29 = sadd.s32 1, %s20
    %s30 = scalar_select %p27, %s29, %s20
    %p31 = scmp.ge.s32.totalorder %s30, 2
    %s32 = scalar_select %p31, 0, %s30
    %s33 = smul.u32 %s20, 2
    %s34 = sadd.s32 %s33, %s21
    %s35 = smul.u32 %s32, 2
    %s36 = sadd.s32 %s35, %s28
    %s37 = ssub.s32 %s34, %s36
    %p38 = scmp.eq.s32.totalorder %s37, 0
    %s40 = sadd.s32 %s39, 1
    %s41 = scalar_select %p38, %s39, %s40
    %p44 = pneg %p38
    %p45 = scmp.eq.s32.totalorder %s13, 3
    %p46 = por %p44, %p45
    %p47 = scmp.ne.s32.totalorder %s39, %s42
    %p48 = scmp.eq.s32.totalorder %s13, 0
    %p49 = por %p47, %p48
    %p50 = scmp.ne.s32.totalorder %s39, %s42
    %p51 = scmp.eq.s32.totalorder %s18, 3
    %p52 = por %p50, %p51
    %p53 = scmp.ne.s32.totalorder %s42, %s43
    %p54 = scmp.eq.s32.totalorder %s18, 0
    %p55 = por %p53, %p54
    %p56 = scmp.ne.s32.totalorder %s42, %s43
    %p57 = scmp.eq.s32.totalorder %s19, 3
    %p58 = por %p56, %p57
    %p60 = scmp.ne.s32.totalorder %s43, %s59
    %p61 = scmp.eq.s32.totalorder %s19, 0
    %p62 = por %p60, %p61
    %s64 = sadd.s32 %s63, 1
    %p67 = scmp.eq.s32.totalorder %s13, 3
    %p68 = scmp.ne.s32.totalorder %s63, %s65
    %p69 = scmp.eq.s32.totalorder %s13, 0
    %p70 = por %p68, %p69
    %p71 = scmp.ne.s32.totalorder %s63, %s65
    %p72 = scmp.eq.s32.totalorder %s18, 3
    %p73 = por %p71, %p72
    %p74 = scmp.ne.s32.totalorder %s65, %s66
    %p75 = scmp.eq.s32.totalorder %s18, 0
    %p76 = por %p74, %p75
    %p77 = scmp.ne.s32.totalorder %s65, %s66
    %p78 = scmp.eq.s32.totalorder %s19, 3
    %p79 = por %p77, %p78
    %p81 = scmp.ne.s32.totalorder %s66, %s80
    %p82 = scmp.eq.s32.totalorder %s19, 0
    %p83 = por %p81, %p82
    %s85 = sadd.s32 %s84, 1
    %p88 = scmp.eq.s32.totalorder %s13, 3
    %p89 = scmp.ne.s32.totalorder %s84, %s86
    %p90 = scmp.eq.s32.totalorder %s13, 0
    %p91 = por %p89, %p90
    %p92 = scmp.ne.s32.totalorder %s84, %s86
    %p93 = scmp.eq.s32.totalorder %s18, 3
    %p94 = por %p92, %p93
    %p95 = scmp.ne.s32.totalorder %s86, %s87
    %p96 = scmp.eq.s32.totalorder %s18, 0
    %p97 = por %p95, %p96
    %p98 = scmp.ne.s32.totalorder %s86, %s87
    %p99 = scmp.eq.s32.totalorder %s19, 3
    %p100 = por %p98, %p99
    %p102 = scmp.ne.s32.totalorder %s87, %s101
    %p103 = scmp.eq.s32.totalorder %s19, 0
    %p104 = por %p102, %p103
    %s106 = sadd.s32 %s105, 1
    %p109 = scmp.eq.s32.totalorder %s13, 3
    %p110 = scmp.ne.s32.totalorder %s105, %s107
    %p111 = scmp.eq.s32.totalorder %s13, 0
    %p112 = por %p110, %p111
    %p113 = scmp.ne.s32.totalorder %s105, %s107
    %p114 = scmp.eq.s32.totalorder %s18, 3
    %p115 = por %p113, %p114
    %p116 = scmp.ne.s32.totalorder %s107, %s108
    %p117 = scmp.eq.s32.totalorder %s18, 0
    %p118 = por %p116, %p117
    %p119 = scmp.ne.s32.totalorder %s107, %s108
    %p120 = scmp.eq.s32.totalorder %s19, 3
    %p121 = por %p119, %p120
    %p123 = scmp.ne.s32.totalorder %s108, %s122
    %p124 = scmp.eq.s32.totalorder %s19, 0
    %p125 = por %p123, %p124
    %s127 = sadd.s32 %s126, 1
    %p130 = scmp.eq.s32.totalorder %s13, 3
    %p131 = scmp.ne.s32.totalorder %s126, %s128
    %p132 = scmp.eq.s32.totalorder %s13, 0
    %p133 = por %p131, %p132
    %p134 = scmp.ne.s32.totalorder %s126, %s128
    %p135 = scmp.eq.s32.totalorder %s18, 3
    %p136 = por %p134, %p135
    %p137 = scmp.ne.s32.totalorder %s128, %s129
    %p138 = scmp.eq.s32.totalorder %s18, 0
    %p139 = por %p137, %p138
    %p140 = scmp.ne.s32.totalorder %s128, %s129
    %p141 = scmp.eq.s32.totalorder %s19, 3
    %p142 = por %p140, %p141
    %p144 = scmp.ne.s32.totalorder %s129, %s143
    %p145 = scmp.eq.s32.totalorder %s19, 0
    %p146 = por %p144, %p145
    %s148 = sadd.s32 %s147, 1
    %p151 = scmp.eq.s32.totalorder %s13, 3
    %p152 = scmp.ne.s32.totalorder %s147, %s149
    %p153 = scmp.eq.s32.totalorder %s13, 0
    %p154 = por %p152, %p153
    %p155 = scmp.ne.s32.totalorder %s147, %s149
    %p156 = scmp.eq.s32.totalorder %s18, 3
    %p157 = por %p155, %p156
    %p158 = scmp.ne.s32.totalorder %s149, %s150
    %p159 = scmp.eq.s32.totalorder %s18, 0
    %p160 = por %p158, %p159
    %p161 = scmp.ne.s32.totalorder %s149, %s150
    %p162 = scmp.eq.s32.totalorder %s19, 3
    %p163 = por %p161, %p162
    %p165 = scmp.ne.s32.totalorder %s150, %s164
    %p166 = scmp.eq.s32.totalorder %s19, 0
    %p167 = por %p165, %p166
    %s169 = sadd.s32 %s168, 1
    %p172 = scmp.eq.s32.totalorder %s13, 3
    %p173 = scmp.ne.s32.totalorder %s168, %s170
    %p174 = scmp.eq.s32.totalorder %s13, 0
    %p175 = por %p173, %p174
    %p176 = scmp.ne.s32.totalorder %s168, %s170
    %p177 = scmp.eq.s32.totalorder %s18, 3
    %p178 = por %p176, %p177
    %p179 = scmp.ne.s32.totalorder %s170, %s171
    %p180 = scmp.eq.s32.totalorder %s18, 0
    %p181 = por %p179, %p180
    %p182 = scmp.ne.s32.totalorder %s170, %s171
    %p183 = scmp.eq.s32.totalorder %s19, 3
    %p184 = por %p182, %p183
    %p186 = scmp.ne.s32.totalorder %s171, %s185
    %p187 = scmp.eq.s32.totalorder %s19, 0
    %p188 = por %p186, %p187
    %s189 = ssub.s32 %s20, %s32
    %p190 = scmp.eq.s32.totalorder %s189, 0
    %s192 = sadd.s32 %s191, 1
    %s193 = scalar_select %p190, %s191, %s192
    %p196 = pneg %p190
    %p197 = scmp.eq.s32.totalorder %s13, 3
    %p198 = por %p196, %p197
    %p199 = scmp.ne.s32.totalorder %s191, %s194
    %p200 = scmp.eq.s32.totalorder %s13, 0
    %p201 = por %p199, %p200
    %p202 = scmp.ne.s32.totalorder %s191, %s194
    %p203 = scmp.eq.s32.totalorder %s18, 3
    %p204 = por %p202, %p203
    %p205 = scmp.ne.s32.totalorder %s194, %s195
    %p206 = scmp.eq.s32.totalorder %s18, 0
    %p207 = por %p205, %p206
    %p208 = scmp.ne.s32.totalorder %s194, %s195
    %p209 = scmp.eq.s32.totalorder %s19, 3
    %p210 = por %p208, %p209
    %p212 = scmp.ne.s32.totalorder %s195, %s211
    %p213 = scmp.eq.s32.totalorder %s19, 0
    %p214 = por %p212, %p213
    %p215 = scmp.le.s32.totalorder 1, %s13
    %p216 = scmp.lt.s32.totalorder %s13, 5
    %p217 = pnand %p215, %p216
    %p218 = pneg %p217
    // Predicated region
    $region9: #{e3_block_forward.5} parent=5 // pred_check
      _
    $region10: #{e3_block_forward.5} parent=5 // pred_check_branch
      %220 = sbr.rel (%p217) target = $region12
    $region11: #{e3_block_forward.5} parent=5 // pred_region
      %s221 = ssub.s32 %s13, 1
      // Predicated region
      $region13: #{e3_block_forward.5} parent=11 // pred_check
        %p222 = pneg %p76
      $region14: #{e3_block_forward.5} parent=11 // pred_check_branch
        %224 = sbr.rel (%p222) target = $region16
      $region15: #{e3_block_forward.5} parent=11 // pred_region
        _
      $region16: #{e3_block_forward.5} parent=11 // pred_fallthru
        _
      // Predicated region
      $region17: #{e3_block_forward.5} parent=11 // pred_check
        %p225 = pneg %p97
      $region18: #{e3_block_forward.5} parent=11 // pred_check_branch
        %227 = sbr.rel (%p225) target = $region20
      $region19: #{e3_block_forward.5} parent=11 // pred_region
        _
      $region20: #{e3_block_forward.5} parent=11 // pred_fallthru
        _
      // Predicated region
      $region21: #{e3_block_forward.5} parent=11 // pred_check
        %p228 = pneg %p118
      $region22: #{e3_block_forward.5} parent=11 // pred_check_branch
        %230 = sbr.rel (%p228) target = $region24
      $region23: #{e3_block_forward.5} parent=11 // pred_region
        _
      $region24: #{e3_block_forward.5} parent=11 // pred_fallthru
        _
      // Predicated region
      $region25: #{e3_block_forward.5} parent=11 // pred_check
        %p231 = pneg %p139
      $region26: #{e3_block_forward.5} parent=11 // pred_check_branch
        %233 = sbr.rel (%p231) target = $region28
      $region27: #{e3_block_forward.5} parent=11 // pred_region
        _
      $region28: #{e3_block_forward.5} parent=11 // pred_fallthru
        _
      // Predicated region
      $region29: #{e3_block_forward.5} parent=11 // pred_check
        %p234 = pneg %p160
      $region30: #{e3_block_forward.5} parent=11 // pred_check_branch
        %236 = sbr.rel (%p234) target = $region32
      $region31: #{e3_block_forward.5} parent=11 // pred_region
        _
      $region32: #{e3_block_forward.5} parent=11 // pred_fallthru
        _
      // Predicated region
      $region33: #{e3_block_forward.5} parent=11 // pred_check
        %p237 = pneg %p181
      $region34: #{e3_block_forward.5} parent=11 // pred_check_branch
        %239 = sbr.rel (%p237) target = $region36
      $region35: #{e3_block_forward.5} parent=11 // pred_region
        _
      $region36: #{e3_block_forward.5} parent=11 // pred_fallthru
        _
    $region12: #{e3_block_forward.5} parent=5 // pred_fallthru
      _
    %p240 = scmp.lt.s32.totalorder %s13, 4
    // Predicated region
    $region37: #{e3_block_forward.5} parent=5 // pred_check
      %p241 = pneg %p240
    $region38: #{e3_block_forward.5} parent=5 // pred_check_branch
      %243 = sbr.rel (%p241) target = $region40
    $region39: #{e3_block_forward.5} parent=5 // pred_region
      // Predicated region
      $region41: #{e3_block_forward.5} parent=39 // pred_check
        %p244 = pneg %p49
      $region42: #{e3_block_forward.5} parent=39 // pred_check_branch
        %246 = sbr.rel (%p244) target = $region44
      $region43: #{e3_block_forward.5} parent=39 // pred_region
        %s247 = smul.u32 %s20, 2
        %s248 = sadd.s32 %s247, %s21
        %s249 = smul.u32 8, %s248
        %p250 = scmp.lt.s32.totalorder %s249, 31
        %s251 = scalar_select %p250, %s249, 31
        %s252 = smul.addr %s251, 8
        %s253 = scalar_lea.vmem %s0, %s252
        %s254 = smul.u32 %s20, 2
        %s255 = sadd.s32 %s254, %s21
        %s256 = smul.u32 8, %s255
      $region44: #{e3_block_forward.5} parent=39 // pred_fallthru
        _
    $region40: #{e3_block_forward.5} parent=5 // pred_fallthru
      _
    %p257 = scmp.le.s32.totalorder 1, %s13
    %p258 = scmp.lt.s32.totalorder %s13, 5
    %p259 = pnand %p257, %p258
    %p260 = pneg %p259
    // Predicated region
    $region45: #{e3_block_forward.5} parent=5 // pred_check
      _
    $region46: #{e3_block_forward.5} parent=5 // pred_check_branch
      %262 = sbr.rel (%p259) target = $region48
    $region47: #{e3_block_forward.5} parent=5 // pred_region
      %s263 = ssub.s32 %s13, 1
      %s264 = smul.u32 %s22, 2
      %s265 = sadd.s32 %s264, %s23
      %s266 = smul.u32 8, %s265
      %p267 = scmp.lt.s32.totalorder %s266, 31
      %s268 = scalar_select %p267, %s266, 31
      %s269 = smul.addr %s268, 8
      %s270 = scalar_lea.vmem %s0, %s269
      %p271 = pneg %p55
      %p272 = pneg %p52
      %p273 = pneg %p76
      %p274 = pneg %p73
      %p275 = pneg %p97
      %p276 = pneg %p94
      %p277 = pneg %p118
      %p278 = pneg %p115
      %p279 = pneg %p139
      %p280 = pneg %p136
      %p281 = pneg %p160
      %p282 = pneg %p157
      %p283 = pneg %p181
      %p284 = pneg %p178
      %p285 = pneg %p207
      %p286 = pneg %p204
      %p287 = scmp.lt.s32.totalorder %s22, 1
      %s288 = scalar_select %p287, %s22, 1
      %s289 = smul.addr %s288, 8
      %s290 = scalar_lea.vmem %s7, %s289
      %s291 = smul.u32 %s22, 2
      %s292 = sadd.s32 %s291, %s23
      %s293 = smul.u32 8, %s292
      %p294 = scmp.lt.s32.totalorder %s293, 31
      %s295 = scalar_select %p294, %s293, 31
      %s296 = smul.addr %s295, 8
      %s297 = scalar_lea.vmem %s0, %s296
      %s298 = smul.u32 %s22, 2
      %s299 = sadd.s32 %s298, %s23
      %s300 = smul.u32 8, %s299
      %p301 = scmp.lt.s32.totalorder %s22, 1
      %s302 = scalar_select %p301, %s22, 1
      %s303 = smul.addr %s302, 8
      %s304 = scalar_lea.vmem %s7, %s303
      %p305 = scmp.eq.s32.totalorder %s23, 0
      // Predicated region
      $region49: #{e3_block_forward.5} parent=47 // pred_check
        %p306 = pneg %p305
      $region50: #{e3_block_forward.5} parent=47 // pred_check_branch
        %308 = sbr.rel (%p306) target = $region52
      $region51: #{e3_block_forward.5} parent=47 // pred_region
        %vm309 = vcmask 130048
        %310 = vst.msk [vmem:[%s304] sm:$0xff] %vm309, 0.0
      $region52: #{e3_block_forward.5} parent=47 // pred_fallthru
        _
      %v311 = vld [vmem:[%s297] sm:$0xff]
      %v312 = vld [vmem:[%s297 + $0x8] sm:$0xff]
      %v313 = vld [vmem:[%s297 + $0x10] sm:$0xff]
      %v314 = vld [vmem:[%s297 + $0x18] sm:$0xff]
      %v315 = vld [vmem:[%s297 + $0x20] sm:$0xff]
      %v316 = vld [vmem:[%s297 + $0x28] sm:$0xff]
      %v317 = vld [vmem:[%s297 + $0x30] sm:$0xff]
      %v318 = vld [vmem:[%s297 + $0x38] sm:$0xff]
      %v319 = vcvt.f32.s32.to.zero.pseudo %v311
      %v320 = vcvt.f32.s32.to.zero.pseudo %v312
      %v321 = vcvt.f32.s32.to.zero.pseudo %v313
      %v322 = vcvt.f32.s32.to.zero.pseudo %v314
      %v323 = vcvt.f32.s32.to.zero.pseudo %v315
      %v324 = vcvt.f32.s32.to.zero.pseudo %v316
      %v325 = vcvt.f32.s32.to.zero.pseudo %v317
      %v326 = vcvt.f32.s32.to.zero.pseudo %v318
      %v327 = vlaneseq
      %v328 = vand.u32 %v327, 127
      %329 = vset.pattern.permute.xlu0 0
      %330 = vperm.xlu0 %329, %v319
      %v331 = vpop.permute.xlu0 %330
      %332 = vset.pattern.permute.xlu0 0
      %333 = vperm.xlu0 %332, %v320
      %v334 = vpop.permute.xlu0 %333
      %335 = vset.pattern.permute.xlu0 0
      %336 = vperm.xlu0 %335, %v321
      %v337 = vpop.permute.xlu0 %336
      %338 = vset.pattern.permute.xlu0 0
      %339 = vperm.xlu0 %338, %v322
      %v340 = vpop.permute.xlu0 %339
      %341 = vset.pattern.permute.xlu0 0
      %342 = vperm.xlu0 %341, %v323
      %v343 = vpop.permute.xlu0 %342
      %344 = vset.pattern.permute.xlu0 0
      %345 = vperm.xlu0 %344, %v324
      %v346 = vpop.permute.xlu0 %345
      %347 = vset.pattern.permute.xlu0 0
      %348 = vperm.xlu0 %347, %v325
      %v349 = vpop.permute.xlu0 %348
      %350 = vset.pattern.permute.xlu0 0
      %351 = vperm.xlu0 %350, %v326
      %v352 = vpop.permute.xlu0 %351
      %vm353 = vcmp.eq.s32.totalorder %v328, %v331
      %vm354 = vcmp.eq.s32.totalorder %v328, %v334
      %vm355 = vcmp.eq.s32.totalorder %v328, %v337
      %vm356 = vcmp.eq.s32.totalorder %v328, %v340
      %vm357 = vcmp.eq.s32.totalorder %v328, %v343
      %vm358 = vcmp.eq.s32.totalorder %v328, %v346
      %vm359 = vcmp.eq.s32.totalorder %v328, %v349
      %vm360 = vcmp.eq.s32.totalorder %v328, %v352
      %v361 = vadd.s32 %v319, 16
      %v362 = vadd.s32 %v320, 16
      %v363 = vadd.s32 %v321, 16
      %v364 = vadd.s32 %v322, 16
      %v365 = vadd.s32 %v323, 16
      %v366 = vadd.s32 %v324, 16
      %v367 = vadd.s32 %v325, 16
      %v368 = vadd.s32 %v326, 16
      %369 = vset.pattern.permute.xlu0 1
      %370 = vperm.xlu0 %369, %v361
      %v371 = vpop.permute.xlu0 %370
      %372 = vset.pattern.permute.xlu0 1
      %373 = vperm.xlu0 %372, %v362
      %v374 = vpop.permute.xlu0 %373
      %375 = vset.pattern.permute.xlu0 1
      %376 = vperm.xlu0 %375, %v363
      %v377 = vpop.permute.xlu0 %376
      %378 = vset.pattern.permute.xlu0 1
      %379 = vperm.xlu0 %378, %v364
      %v380 = vpop.permute.xlu0 %379
      %381 = vset.pattern.permute.xlu0 1
      %382 = vperm.xlu0 %381, %v365
      %v383 = vpop.permute.xlu0 %382
      %384 = vset.pattern.permute.xlu0 1
      %385 = vperm.xlu0 %384, %v366
      %v386 = vpop.permute.xlu0 %385
      %387 = vset.pattern.permute.xlu0 1
      %388 = vperm.xlu0 %387, %v367
      %v389 = vpop.permute.xlu0 %388
      %390 = vset.pattern.permute.xlu0 1
      %391 = vperm.xlu0 %390, %v368
      %v392 = vpop.permute.xlu0 %391
      %vm393 = vcmp.eq.s32.totalorder %v328, %v371
      %vm394 = vcmp.eq.s32.totalorder %v328, %v374
      %vm395 = vcmp.eq.s32.totalorder %v328, %v377
      %vm396 = vcmp.eq.s32.totalorder %v328, %v380
      %vm397 = vcmp.eq.s32.totalorder %v328, %v383
      %vm398 = vcmp.eq.s32.totalorder %v328, %v386
      %vm399 = vcmp.eq.s32.totalorder %v328, %v389
      %vm400 = vcmp.eq.s32.totalorder %v328, %v392
      %vm401 = vmor %vm353, %vm393
      %vm402 = vmor %vm354, %vm394
      %vm403 = vmor %vm355, %vm395
      %vm404 = vmor %vm356, %vm396
      %vm405 = vmor %vm357, %vm397
      %vm406 = vmor %vm358, %vm398
      %vm407 = vmor %vm359, %vm399
      %vm408 = vmor %vm360, %vm400
      %v409 = vsel %vm401, 1, 0
      %v410 = vsel %vm402, 1, 0
      %v411 = vsel %vm403, 1, 0
      %v412 = vsel %vm404, 1, 0
      %v413 = vsel %vm405, 1, 0
      %v414 = vsel %vm406, 1, 0
      %v415 = vsel %vm407, 1, 0
      %v416 = vsel %vm408, 1, 0
      %v417 = vcvt.s32.f32 %v409
      %v418 = vcvt.s32.f32 %v410
      %v419 = vcvt.s32.f32 %v411
      %v420 = vcvt.s32.f32 %v412
      %v421 = vcvt.s32.f32 %v413
      %v422 = vcvt.s32.f32 %v414
      %v423 = vcvt.s32.f32 %v415
      %v424 = vcvt.s32.f32 %v416
      %v425 = vld [vmem:[%s1] sm:$0xff]
      %v426 = vld [vmem:[%s1 + $0x8] sm:$0xff]
      %v427 = vld [vmem:[%s1 + $0x10] sm:$0xff]
      %v428 = vld [vmem:[%s1 + $0x18] sm:$0xff]
      %v429 = vld [vmem:[%s2] sm:$0x1]
      %431 = vset.pattern.permute.xlu0 3
      %432 = vperm.xlu0 %431, %v311
      %v433 = vpop.permute.xlu0 %432
      %436 = vset.pattern.permute.xlu0 3
      %437 = vperm.xlu0 %436, %v312
      %v438 = vpop.permute.xlu0 %437
      %441 = vset.pattern.permute.xlu0 3
      %442 = vperm.xlu0 %441, %v313
      %v443 = vpop.permute.xlu0 %442
      %446 = vset.pattern.permute.xlu0 3
      %447 = vperm.xlu0 %446, %v314
      %v448 = vpop.permute.xlu0 %447
      %451 = vset.pattern.permute.xlu0 3
      %452 = vperm.xlu0 %451, %v315
      %v453 = vpop.permute.xlu0 %452
      %456 = vset.pattern.permute.xlu0 3
      %457 = vperm.xlu0 %456, %v316
      %v458 = vpop.permute.xlu0 %457
      %461 = vset.pattern.permute.xlu0 3
      %462 = vperm.xlu0 %461, %v317
      %v463 = vpop.permute.xlu0 %462
      %466 = vset.pattern.permute.xlu0 3
      %467 = vperm.xlu0 %466, %v318
      %v468 = vpop.permute.xlu0 %467
      %v470 = vperm.slane %v429, 0
      %v471 = vmul.f32 %v433, %v470
      %v472 = vmul.f32 %v438, %v470
      %v473 = vmul.f32 %v443, %v470
      %v474 = vmul.f32 %v448, %v470
      %v475 = vmul.f32 %v453, %v470
      %v476 = vmul.f32 %v458, %v470
      %v477 = vmul.f32 %v463, %v470
      %v478 = vmul.f32 %v468, %v470
      %vm479 = vcmask 261120
      %v481 = vsel %vm479, %v417, 0
      %v484 = vsel %vm479, %v418, 0
      %v487 = vsel %vm479, %v419, 0
      %v490 = vsel %vm479, %v420, 0
      %v493 = vsel %vm479, %v421, 0
      %v496 = vsel %vm479, %v422, 0
      %v499 = vsel %vm479, %v423, 0
      %v502 = vsel %vm479, %v424, 0
      %504 = vmatpush.msra.mxu0 0.0
      %505 = vmatpush.msra.mxu0 0.0
      %506 = vmatpush.msra.mxu0 0.0
      %507 = vmatpush.msra.mxu0 0.0
      %508 = vmatpush.msra.mxu0 0.0
      %509 = vmatpush.msra.mxu0 0.0
      %510 = vmatpush.msra.mxu0 0.0
      %511 = vmatpush.msra.mxu0 0.0
      %512 = vmatpush.msra.mxu0 0.0
      %513 = vmatpush.msra.mxu0 0.0
      %514 = vmatpush.msra.mxu0 0.0
      %515 = vmatpush.msra.mxu0 0.0
      %516 = vmatpush.msra.mxu0 %v428
      %517 = vmatpush.msra.mxu0 %v427
      %518 = vmatpush.msra.mxu0 %v426
      %519 = vmatpush.msra.mxu0 %v425
      %520 = vmatmul.f32.gmra.mxu0 %v481
      %v521 = vpop.f32.mrf.mxu0
      %v522 = vadd.f32 %v471, %v521
      %523 = vmatmul.f32.gmra.mxu0 %v484
      %v524 = vpop.f32.mrf.mxu0
      %v525 = vadd.f32 %v472, %v524
      %526 = vmatmul.f32.gmra.mxu0 %v487
      %v527 = vpop.f32.mrf.mxu0
      %v528 = vadd.f32 %v473, %v527
      %529 = vmatmul.f32.gmra.mxu0 %v490
      %v530 = vpop.f32.mrf.mxu0
      %v531 = vadd.f32 %v474, %v530
      %532 = vmatmul.f32.gmra.mxu0 %v493
      %v533 = vpop.f32.mrf.mxu0
      %v534 = vadd.f32 %v475, %v533
      %535 = vmatmul.f32.gmra.mxu0 %v496
      %v536 = vpop.f32.mrf.mxu0
      %v537 = vadd.f32 %v476, %v536
      %538 = vmatmul.f32.gmra.mxu0 %v499
      %v539 = vpop.f32.mrf.mxu0
      %v540 = vadd.f32 %v477, %v539
      %541 = vmatmul.f32.gmra.mxu0 %v502
      %v542 = vpop.f32.mrf.mxu0
      %v543 = vadd.f32 %v478, %v542
      %544 = vdwg.mxu0
      %v545 = vld [vmem:[%s2 + $0x1] sm:$0x1]
      %546 = vset.pattern.permute.xlu0 4
      %547 = vperm.xlu0 %546, %v311
      %v548 = vpop.permute.xlu0 %547
      %550 = vset.pattern.permute.xlu0 4
      %551 = vperm.xlu0 %550, %v312
      %v552 = vpop.permute.xlu0 %551
      %554 = vset.pattern.permute.xlu0 4
      %555 = vperm.xlu0 %554, %v313
      %v556 = vpop.permute.xlu0 %555
      %558 = vset.pattern.permute.xlu0 4
      %559 = vperm.xlu0 %558, %v314
      %v560 = vpop.permute.xlu0 %559
      %562 = vset.pattern.permute.xlu0 4
      %563 = vperm.xlu0 %562, %v315
      %v564 = vpop.permute.xlu0 %563
      %566 = vset.pattern.permute.xlu0 4
      %567 = vperm.xlu0 %566, %v316
      %v568 = vpop.permute.xlu0 %567
      %570 = vset.pattern.permute.xlu0 4
      %571 = vperm.xlu0 %570, %v317
      %v572 = vpop.permute.xlu0 %571
      %574 = vset.pattern.permute.xlu0 4
      %575 = vperm.xlu0 %574, %v318
      %v576 = vpop.permute.xlu0 %575
      %v578 = vperm.slane %v545, 0
      %v579 = vmul.f32 %v548, %v578
      %v580 = vmul.f32 %v552, %v578
      %v581 = vmul.f32 %v556, %v578
      %v582 = vmul.f32 %v560, %v578
      %v583 = vmul.f32 %v564, %v578
      %v584 = vmul.f32 %v568, %v578
      %v585 = vmul.f32 %v572, %v578
      %v586 = vmul.f32 %v576, %v578
      %v587 = vadd.f32 %v522, %v579
      %v588 = vadd.f32 %v525, %v580
      %v589 = vadd.f32 %v528, %v581
      %v590 = vadd.f32 %v531, %v582
      %v591 = vadd.f32 %v534, %v583
      %v592 = vadd.f32 %v537, %v584
      %v593 = vadd.f32 %v540, %v585
      %v594 = vadd.f32 %v543, %v586
      %v595 = vld [vmem:[%s3] sm:$0x1]
      %v597 = vperm.slane %v595, 0
      %v599 = vadd.f32 %v587, %v597
      %v600 = vadd.f32 %v588, %v597
      %v601 = vadd.f32 %v589, %v597
      %v602 = vadd.f32 %v590, %v597
      %v603 = vadd.f32 %v591, %v597
      %v604 = vadd.f32 %v592, %v597
      %v605 = vadd.f32 %v593, %v597
      %v606 = vadd.f32 %v594, %v597
      %v607 = vxor.u32 %v599, 2147483648
      %v608 = vxor.u32 %v600, 2147483648
      %v609 = vxor.u32 %v601, 2147483648
      %v610 = vxor.u32 %v602, 2147483648
      %v611 = vxor.u32 %v603, 2147483648
      %v612 = vxor.u32 %v604, 2147483648
      %v613 = vxor.u32 %v605, 2147483648
      %v614 = vxor.u32 %v606, 2147483648
      %v615 = vmul.f32 %v607, 1.442695
      %v616 = vpow.pop %v615
      %v617 = vmul.f32 %v608, 1.442695
      %v618 = vpow.pop %v617
      %v619 = vmul.f32 %v609, 1.442695
      %v620 = vpow.pop %v619
      %v621 = vmul.f32 %v610, 1.442695
      %v622 = vpow.pop %v621
      %v623 = vmul.f32 %v611, 1.442695
      %v624 = vpow.pop %v623
      %v625 = vmul.f32 %v612, 1.442695
      %v626 = vpow.pop %v625
      %v627 = vmul.f32 %v613, 1.442695
      %v628 = vpow.pop %v627
      %v629 = vmul.f32 %v614, 1.442695
      %v630 = vpow.pop %v629
      %v631 = vadd.f32 %v616, 1.0
      %v632 = vadd.f32 %v618, 1.0
      %v633 = vadd.f32 %v620, 1.0
      %v634 = vadd.f32 %v622, 1.0
      %v635 = vadd.f32 %v624, 1.0
      %v636 = vadd.f32 %v626, 1.0
      %v637 = vadd.f32 %v628, 1.0
      %v638 = vadd.f32 %v630, 1.0
      %v639 = vrcp.pop %v631
      %v640 = vmul.f32 %v631, %v639
      %v641 = vsub.f32 1.0, %v640
      %v642 = vmul.f32 %v639, %v641
      %v643 = vadd.f32 %v639, %v642
      %vm644 = vweird.f32 %v631
      %vm645 = vweird.f32 %v639
      %vm646 = vmor %vm644, %vm645
      %v647 = vsel %vm646, %v639, %v643
      %v648 = vand.u32 2147483647, %v631
      %vm649 = vcmp.eq.f32.partialorder %v648, 8.507059e+37
      %v650 = vand.u32 %v631, 2147483648
      %v651 = vor.u32 1.1754944e-38, %v650
      %v652 = vsel %vm649, %v651, %v647
      %v653 = vmul.f32 1.0, %v652
      %v654 = vrcp.pop %v632
      %v655 = vmul.f32 %v632, %v654
      %v656 = vsub.f32 1.0, %v655
      %v657 = vmul.f32 %v654, %v656
      %v658 = vadd.f32 %v654, %v657
      %vm659 = vweird.f32 %v632
      %vm660 = vweird.f32 %v654
      %vm661 = vmor %vm659, %vm660
      %v662 = vsel %vm661, %v654, %v658
      %v663 = vand.u32 2147483647, %v632
      %vm664 = vcmp.eq.f32.partialorder %v663, 8.507059e+37
      %v665 = vand.u32 %v632, 2147483648
      %v666 = vor.u32 1.1754944e-38, %v665
      %v667 = vsel %vm664, %v666, %v662
      %v668 = vmul.f32 1.0, %v667
      %v669 = vrcp.pop %v633
      %v670 = vmul.f32 %v633, %v669
      %v671 = vsub.f32 1.0, %v670
      %v672 = vmul.f32 %v669, %v671
      %v673 = vadd.f32 %v669, %v672
      %vm674 = vweird.f32 %v633
      %vm675 = vweird.f32 %v669
      %vm676 = vmor %vm674, %vm675
      %v677 = vsel %vm676, %v669, %v673
      %v678 = vand.u32 2147483647, %v633
      %vm679 = vcmp.eq.f32.partialorder %v678, 8.507059e+37
      %v680 = vand.u32 %v633, 2147483648
      %v681 = vor.u32 1.1754944e-38, %v680
      %v682 = vsel %vm679, %v681, %v677
      %v683 = vmul.f32 1.0, %v682
      %v684 = vrcp.pop %v634
      %v685 = vmul.f32 %v634, %v684
      %v686 = vsub.f32 1.0, %v685
      %v687 = vmul.f32 %v684, %v686
      %v688 = vadd.f32 %v684, %v687
      %vm689 = vweird.f32 %v634
      %vm690 = vweird.f32 %v684
      %vm691 = vmor %vm689, %vm690
      %v692 = vsel %vm691, %v684, %v688
      %v693 = vand.u32 2147483647, %v634
      %vm694 = vcmp.eq.f32.partialorder %v693, 8.507059e+37
      %v695 = vand.u32 %v634, 2147483648
      %v696 = vor.u32 1.1754944e-38, %v695
      %v697 = vsel %vm694, %v696, %v692
      %v698 = vmul.f32 1.0, %v697
      %v699 = vrcp.pop %v635
      %v700 = vmul.f32 %v635, %v699
      %v701 = vsub.f32 1.0, %v700
      %v702 = vmul.f32 %v699, %v701
      %v703 = vadd.f32 %v699, %v702
      %vm704 = vweird.f32 %v635
      %vm705 = vweird.f32 %v699
      %vm706 = vmor %vm704, %vm705
      %v707 = vsel %vm706, %v699, %v703
      %v708 = vand.u32 2147483647, %v635
      %vm709 = vcmp.eq.f32.partialorder %v708, 8.507059e+37
      %v710 = vand.u32 %v635, 2147483648
      %v711 = vor.u32 1.1754944e-38, %v710
      %v712 = vsel %vm709, %v711, %v707
      %v713 = vmul.f32 1.0, %v712
      %v714 = vrcp.pop %v636
      %v715 = vmul.f32 %v636, %v714
      %v716 = vsub.f32 1.0, %v715
      %v717 = vmul.f32 %v714, %v716
      %v718 = vadd.f32 %v714, %v717
      %vm719 = vweird.f32 %v636
      %vm720 = vweird.f32 %v714
      %vm721 = vmor %vm719, %vm720
      %v722 = vsel %vm721, %v714, %v718
      %v723 = vand.u32 2147483647, %v636
      %vm724 = vcmp.eq.f32.partialorder %v723, 8.507059e+37
      %v725 = vand.u32 %v636, 2147483648
      %v726 = vor.u32 1.1754944e-38, %v725
      %v727 = vsel %vm724, %v726, %v722
      %v728 = vmul.f32 1.0, %v727
      %v729 = vrcp.pop %v637
      %v730 = vmul.f32 %v637, %v729
      %v731 = vsub.f32 1.0, %v730
      %v732 = vmul.f32 %v729, %v731
      %v733 = vadd.f32 %v729, %v732
      %vm734 = vweird.f32 %v637
      %vm735 = vweird.f32 %v729
      %vm736 = vmor %vm734, %vm735
      %v737 = vsel %vm736, %v729, %v733
      %v738 = vand.u32 2147483647, %v637
      %vm739 = vcmp.eq.f32.partialorder %v738, 8.507059e+37
      %v740 = vand.u32 %v637, 2147483648
      %v741 = vor.u32 1.1754944e-38, %v740
      %v742 = vsel %vm739, %v741, %v737
      %v743 = vmul.f32 1.0, %v742
      %v744 = vrcp.pop %v638
      %v745 = vmul.f32 %v638, %v744
      %v746 = vsub.f32 1.0, %v745
      %v747 = vmul.f32 %v744, %v746
      %v748 = vadd.f32 %v744, %v747
      %vm749 = vweird.f32 %v638
      %vm750 = vweird.f32 %v744
      %vm751 = vmor %vm749, %vm750
      %v752 = vsel %vm751, %v744, %v748
      %v753 = vand.u32 2147483647, %v638
      %vm754 = vcmp.eq.f32.partialorder %v753, 8.507059e+37
      %v755 = vand.u32 %v638, 2147483648
      %v756 = vor.u32 1.1754944e-38, %v755
      %v757 = vsel %vm754, %v756, %v752
      %v758 = vmul.f32 1.0, %v757
      %v759 = vmul.f32 %v599, %v653
      %v760 = vmul.f32 %v600, %v668
      %v761 = vmul.f32 %v601, %v683
      %v762 = vmul.f32 %v602, %v698
      %v763 = vmul.f32 %v603, %v713
      %v764 = vmul.f32 %v604, %v728
      %v765 = vmul.f32 %v605, %v743
      %v766 = vmul.f32 %v606, %v758
      %v767 = vld [vmem:[%s4] sm:$0xff]
      %v768 = vld [vmem:[%s4 + $0x8] sm:$0xff]
      %v769 = vld [vmem:[%s4 + $0x10] sm:$0xff]
      %v770 = vld [vmem:[%s4 + $0x18] sm:$0xff]
      %v771 = vld [vmem:[%s5] sm:$0x1]
      %v773 = vperm.slane %v771, 0
      %v776 = vsel %vm479, %v759, 0
      %v779 = vsel %vm479, %v760, 0
      %v782 = vsel %vm479, %v761, 0
      %v785 = vsel %vm479, %v762, 0
      %v788 = vsel %vm479, %v763, 0
      %v791 = vsel %vm479, %v764, 0
      %v794 = vsel %vm479, %v765, 0
      %v797 = vsel %vm479, %v766, 0
      %799 = vmatpush.msra.mxu0 0.0
      %800 = vmatpush.msra.mxu0 0.0
      %801 = vmatpush.msra.mxu0 0.0
      %802 = vmatpush.msra.mxu0 0.0
      %803 = vmatpush.msra.mxu0 0.0
      %804 = vmatpush.msra.mxu0 0.0
      %805 = vmatpush.msra.mxu0 0.0
      %806 = vmatpush.msra.mxu0 0.0
      %807 = vmatpush.msra.mxu0 0.0
      %808 = vmatpush.msra.mxu0 0.0
      %809 = vmatpush.msra.mxu0 0.0
      %810 = vmatpush.msra.mxu0 0.0
      %811 = vmatpush.msra.mxu0 %v770
      %812 = vmatpush.msra.mxu0 %v769
      %813 = vmatpush.msra.mxu0 %v768
      %814 = vmatpush.msra.mxu0 %v767
      %815 = vmatmul.f32.gmra.mxu0 %v776
      %v816 = vpop.f32.mrf.mxu0
      %v817 = vadd.f32 %v773, %v816
      %818 = vmatmul.f32.gmra.mxu0 %v779
      %v819 = vpop.f32.mrf.mxu0
      %v820 = vadd.f32 %v773, %v819
      %821 = vmatmul.f32.gmra.mxu0 %v782
      %v822 = vpop.f32.mrf.mxu0
      %v823 = vadd.f32 %v773, %v822
      %824 = vmatmul.f32.gmra.mxu0 %v785
      %v825 = vpop.f32.mrf.mxu0
      %v826 = vadd.f32 %v773, %v825
      %827 = vmatmul.f32.gmra.mxu0 %v788
      %v828 = vpop.f32.mrf.mxu0
      %v829 = vadd.f32 %v773, %v828
      %830 = vmatmul.f32.gmra.mxu0 %v791
      %v831 = vpop.f32.mrf.mxu0
      %v832 = vadd.f32 %v773, %v831
      %833 = vmatmul.f32.gmra.mxu0 %v794
      %v834 = vpop.f32.mrf.mxu0
      %v835 = vadd.f32 %v773, %v834
      %836 = vmatmul.f32.gmra.mxu0 %v797
      %v837 = vpop.f32.mrf.mxu0
      %v838 = vadd.f32 %v773, %v837
      %839 = vdwg.mxu0
      %v840 = vxor.u32 %v817, 2147483648
      %v841 = vxor.u32 %v820, 2147483648
      %v842 = vxor.u32 %v823, 2147483648
      %v843 = vxor.u32 %v826, 2147483648
      %v844 = vxor.u32 %v829, 2147483648
      %v845 = vxor.u32 %v832, 2147483648
      %v846 = vxor.u32 %v835, 2147483648
      %v847 = vxor.u32 %v838, 2147483648
      %v848 = vmul.f32 %v840, 1.442695
      %v849 = vpow.pop %v848
      %v850 = vmul.f32 %v841, 1.442695
      %v851 = vpow.pop %v850
      %v852 = vmul.f32 %v842, 1.442695
      %v853 = vpow.pop %v852
      %v854 = vmul.f32 %v843, 1.442695
      %v855 = vpow.pop %v854
      %v856 = vmul.f32 %v844, 1.442695
      %v857 = vpow.pop %v856
      %v858 = vmul.f32 %v845, 1.442695
      %v859 = vpow.pop %v858
      %v860 = vmul.f32 %v846, 1.442695
      %v861 = vpow.pop %v860
      %v862 = vmul.f32 %v847, 1.442695
      %v863 = vpow.pop %v862
      %v864 = vadd.f32 %v849, 1.0
      %v865 = vadd.f32 %v851, 1.0
      %v866 = vadd.f32 %v853, 1.0
      %v867 = vadd.f32 %v855, 1.0
      %v868 = vadd.f32 %v857, 1.0
      %v869 = vadd.f32 %v859, 1.0
      %v870 = vadd.f32 %v861, 1.0
      %v871 = vadd.f32 %v863, 1.0
      %v872 = vrcp.pop %v864
      %v873 = vmul.f32 %v864, %v872
      %v874 = vsub.f32 1.0, %v873
      %v875 = vmul.f32 %v872, %v874
      %v876 = vadd.f32 %v872, %v875
      %vm877 = vweird.f32 %v864
      %vm878 = vweird.f32 %v872
      %vm879 = vmor %vm877, %vm878
      %v880 = vsel %vm879, %v872, %v876
      %v881 = vand.u32 2147483647, %v864
      %vm882 = vcmp.eq.f32.partialorder %v881, 8.507059e+37
      %v883 = vand.u32 %v864, 2147483648
      %v884 = vor.u32 1.1754944e-38, %v883
      %v885 = vsel %vm882, %v884, %v880
      %v886 = vmul.f32 1.0, %v885
      %v887 = vrcp.pop %v865
      %v888 = vmul.f32 %v865, %v887
      %v889 = vsub.f32 1.0, %v888
      %v890 = vmul.f32 %v887, %v889
      %v891 = vadd.f32 %v887, %v890
      %vm892 = vweird.f32 %v865
      %vm893 = vweird.f32 %v887
      %vm894 = vmor %vm892, %vm893
      %v895 = vsel %vm894, %v887, %v891
      %v896 = vand.u32 2147483647, %v865
      %vm897 = vcmp.eq.f32.partialorder %v896, 8.507059e+37
      %v898 = vand.u32 %v865, 2147483648
      %v899 = vor.u32 1.1754944e-38, %v898
      %v900 = vsel %vm897, %v899, %v895
      %v901 = vmul.f32 1.0, %v900
      %v902 = vrcp.pop %v866
      %v903 = vmul.f32 %v866, %v902
      %v904 = vsub.f32 1.0, %v903
      %v905 = vmul.f32 %v902, %v904
      %v906 = vadd.f32 %v902, %v905
      %vm907 = vweird.f32 %v866
      %vm908 = vweird.f32 %v902
      %vm909 = vmor %vm907, %vm908
      %v910 = vsel %vm909, %v902, %v906
      %v911 = vand.u32 2147483647, %v866
      %vm912 = vcmp.eq.f32.partialorder %v911, 8.507059e+37
      %v913 = vand.u32 %v866, 2147483648
      %v914 = vor.u32 1.1754944e-38, %v913
      %v915 = vsel %vm912, %v914, %v910
      %v916 = vmul.f32 1.0, %v915
      %v917 = vrcp.pop %v867
      %v918 = vmul.f32 %v867, %v917
      %v919 = vsub.f32 1.0, %v918
      %v920 = vmul.f32 %v917, %v919
      %v921 = vadd.f32 %v917, %v920
      %vm922 = vweird.f32 %v867
      %vm923 = vweird.f32 %v917
      %vm924 = vmor %vm922, %vm923
      %v925 = vsel %vm924, %v917, %v921
      %v926 = vand.u32 2147483647, %v867
      %vm927 = vcmp.eq.f32.partialorder %v926, 8.507059e+37
      %v928 = vand.u32 %v867, 2147483648
      %v929 = vor.u32 1.1754944e-38, %v928
      %v930 = vsel %vm927, %v929, %v925
      %v931 = vmul.f32 1.0, %v930
      %v932 = vrcp.pop %v868
      %v933 = vmul.f32 %v868, %v932
      %v934 = vsub.f32 1.0, %v933
      %v935 = vmul.f32 %v932, %v934
      %v936 = vadd.f32 %v932, %v935
      %vm937 = vweird.f32 %v868
      %vm938 = vweird.f32 %v932
      %vm939 = vmor %vm937, %vm938
      %v940 = vsel %vm939, %v932, %v936
      %v941 = vand.u32 2147483647, %v868
      %vm942 = vcmp.eq.f32.partialorder %v941, 8.507059e+37
      %v943 = vand.u32 %v868, 2147483648
      %v944 = vor.u32 1.1754944e-38, %v943
      %v945 = vsel %vm942, %v944, %v940
      %v946 = vmul.f32 1.0, %v945
      %v947 = vrcp.pop %v869
      %v948 = vmul.f32 %v869, %v947
      %v949 = vsub.f32 1.0, %v948
      %v950 = vmul.f32 %v947, %v949
      %v951 = vadd.f32 %v947, %v950
      %vm952 = vweird.f32 %v869
      %vm953 = vweird.f32 %v947
      %vm954 = vmor %vm952, %vm953
      %v955 = vsel %vm954, %v947, %v951
      %v956 = vand.u32 2147483647, %v869
      %vm957 = vcmp.eq.f32.partialorder %v956, 8.507059e+37
      %v958 = vand.u32 %v869, 2147483648
      %v959 = vor.u32 1.1754944e-38, %v958
      %v960 = vsel %vm957, %v959, %v955
      %v961 = vmul.f32 1.0, %v960
      %v962 = vrcp.pop %v870
      %v963 = vmul.f32 %v870, %v962
      %v964 = vsub.f32 1.0, %v963
      %v965 = vmul.f32 %v962, %v964
      %v966 = vadd.f32 %v962, %v965
      %vm967 = vweird.f32 %v870
      %vm968 = vweird.f32 %v962
      %vm969 = vmor %vm967, %vm968
      %v970 = vsel %vm969, %v962, %v966
      %v971 = vand.u32 2147483647, %v870
      %vm972 = vcmp.eq.f32.partialorder %v971, 8.507059e+37
      %v973 = vand.u32 %v870, 2147483648
      %v974 = vor.u32 1.1754944e-38, %v973
      %v975 = vsel %vm972, %v974, %v970
      %v976 = vmul.f32 1.0, %v975
      %v977 = vrcp.pop %v871
      %v978 = vmul.f32 %v871, %v977
      %v979 = vsub.f32 1.0, %v978
      %v980 = vmul.f32 %v977, %v979
      %v981 = vadd.f32 %v977, %v980
      %vm982 = vweird.f32 %v871
      %vm983 = vweird.f32 %v977
      %vm984 = vmor %vm982, %vm983
      %v985 = vsel %vm984, %v977, %v981
      %v986 = vand.u32 2147483647, %v871
      %vm987 = vcmp.eq.f32.partialorder %v986, 8.507059e+37
      %v988 = vand.u32 %v871, 2147483648
      %v989 = vor.u32 1.1754944e-38, %v988
      %v990 = vsel %vm987, %v989, %v985
      %v991 = vmul.f32 1.0, %v990
      %v992 = vmul.f32 %v817, %v886
      %v993 = vmul.f32 %v820, %v901
      %v994 = vmul.f32 %v823, %v916
      %v995 = vmul.f32 %v826, %v931
      %v996 = vmul.f32 %v829, %v946
      %v997 = vmul.f32 %v832, %v961
      %v998 = vmul.f32 %v835, %v976
      %v999 = vmul.f32 %v838, %v991
      %v1000 = vld [vmem:[%s6] sm:$0x1]
      %v1002 = vperm.slane %v1000, 0
      %v1004 = vmul.f32 %v992, %v1002
      %v1005 = vmul.f32 %v993, %v1002
      %v1006 = vmul.f32 %v994, %v1002
      %v1007 = vmul.f32 %v995, %v1002
      %v1008 = vmul.f32 %v996, %v1002
      %v1009 = vmul.f32 %v997, %v1002
      %v1010 = vmul.f32 %v998, %v1002
      %v1011 = vmul.f32 %v999, %v1002
      %v1012 = vsel %vm479, %v1004, 0.0
      %1013 = vadd.xlane.f32.xlu0 %v1012
      %v1014 = vpop.xlane.xlu0 %1013
      %v1015 = vsel %vm479, %v1005, 0.0
      %1016 = vadd.xlane.f32.xlu0 %v1015
      %v1017 = vpop.xlane.xlu0 %1016
      %v1018 = vsel %vm479, %v1006, 0.0
      %1019 = vadd.xlane.f32.xlu0 %v1018
      %v1020 = vpop.xlane.xlu0 %1019
      %v1021 = vsel %vm479, %v1007, 0.0
      %1022 = vadd.xlane.f32.xlu0 %v1021
      %v1023 = vpop.xlane.xlu0 %1022
      %v1024 = vsel %vm479, %v1008, 0.0
      %1025 = vadd.xlane.f32.xlu0 %v1024
      %v1026 = vpop.xlane.xlu0 %1025
      %v1027 = vsel %vm479, %v1009, 0.0
      %1028 = vadd.xlane.f32.xlu0 %v1027
      %v1029 = vpop.xlane.xlu0 %1028
      %v1030 = vsel %vm479, %v1010, 0.0
      %1031 = vadd.xlane.f32.xlu0 %v1030
      %v1032 = vpop.xlane.xlu0 %1031
      %v1033 = vsel %vm479, %v1011, 0.0
      %1034 = vadd.xlane.f32.xlu0 %v1033
      %v1035 = vpop.xlane.xlu0 %1034
      %vm1036 = vcmp.ge.s32.totalorder %v328, 5
      %v1037 = vsel %vm1036, 1, 0
      %v1038 = vcvt.s32.f32 %v1037
      %v1039 = vmul.f32 %v311, %v1038
      %v1040 = vmul.f32 %v312, %v1038
      %v1041 = vmul.f32 %v313, %v1038
      %v1042 = vmul.f32 %v314, %v1038
      %v1043 = vmul.f32 %v315, %v1038
      %v1044 = vmul.f32 %v316, %v1038
      %v1045 = vmul.f32 %v317, %v1038
      %v1046 = vmul.f32 %v318, %v1038
      %v1047 = vtanh.pop %v1014
      %v1048 = vtanh.pop %v1017
      %v1049 = vtanh.pop %v1020
      %v1050 = vtanh.pop %v1023
      %v1051 = vtanh.pop %v1026
      %v1052 = vtanh.pop %v1029
      %v1053 = vtanh.pop %v1032
      %v1054 = vtanh.pop %v1035
      %v1055 = vmul.f32 %v1047, 3.0
      %v1056 = vmul.f32 %v1048, 3.0
      %v1057 = vmul.f32 %v1049, 3.0
      %v1058 = vmul.f32 %v1050, 3.0
      %v1059 = vmul.f32 %v1051, 3.0
      %v1060 = vmul.f32 %v1052, 3.0
      %v1061 = vmul.f32 %v1053, 3.0
      %v1062 = vmul.f32 %v1054, 3.0
      %v1063 = vmul.f32 %v1039, %v1055
      %v1064 = vmul.f32 %v1040, %v1056
      %v1065 = vmul.f32 %v1041, %v1057
      %v1066 = vmul.f32 %v1042, %v1058
      %v1067 = vmul.f32 %v1043, %v1059
      %v1068 = vmul.f32 %v1044, %v1060
      %v1069 = vmul.f32 %v1045, %v1061
      %v1070 = vmul.f32 %v1046, %v1062
      %v1071 = vld [vmem:[%s304] sm:$0xff]
      %1072 = vxpose.xlu0.b32.start [1/16] %v1063, 128
      %1073 = vxpose.xlu0.b32.cont [2/16] %v1064, 128
      %1074 = vxpose.xlu0.b32.cont [3/16] %v1065, 128
      %1075 = vxpose.xlu0.b32.cont [4/16] %v1066, 128
      %1076 = vxpose.xlu0.b32.cont [5/16] %v1067, 128
      %1077 = vxpose.xlu0.b32.cont [6/16] %v1068, 128
      %1078 = vxpose.xlu0.b32.cont [7/16] %v1069, 128
      %1079 = vxpose.xlu0.b32.cont [8/16] %v1070, 128
      %1080 = vxpose.xlu0.b32.cont [9/16] 0.0, 128
      %1081 = vxpose.xlu0.b32.cont [10/16] 0.0, 128
      %1082 = vxpose.xlu0.b32.cont [11/16] 0.0, 128
      %1083 = vxpose.xlu0.b32.cont [12/16] 0.0, 128
      %1084 = vxpose.xlu0.b32.cont [13/16] 0.0, 128
      %1085 = vxpose.xlu0.b32.cont [14/16] 0.0, 128
      %1086 = vxpose.xlu0.b32.cont [15/16] 0.0, 128
      %1087 = vxpose.xlu0.b32.end [16/16] 0.0, 128
      %v1088 = vpop.trf.xlu0
      %v1089 = vpop.trf.xlu0
      %v1090 = vpop.trf.xlu0
      %v1091 = vpop.trf.xlu0
      %v1092 = vpop.trf.xlu0
      %v1093 = vpop.trf.xlu0
      %v1094 = vpop.trf.xlu0
      %v1095 = vpop.trf.xlu0
      %v1096 = vpop.trf.xlu0
      %v1097 = vpop.trf.xlu0
      %v1098 = vpop.trf.xlu0
      %v1099 = vpop.trf.xlu0
      %v1100 = vpop.trf.xlu0
      %v1101 = vpop.trf.xlu0
      %v1102 = vpop.trf.xlu0
      %v1103 = vpop.trf.xlu0
      %vm1104 = vcmask 523264
      %v1106 = vsel %vm1104, %v1088, 0
      %1108 = vmatpush.msra.mxu0 0.0
      %1109 = vmatpush.msra.mxu0 0.0
      %1110 = vmatpush.msra.mxu0 0.0
      %1111 = vmatpush.msra.mxu0 0.0
      %1112 = vmatpush.msra.mxu0 0.0
      %1113 = vmatpush.msra.mxu0 0.0
      %1114 = vmatpush.msra.mxu0 0.0
      %1115 = vmatpush.msra.mxu0 0.0
      %1116 = vmatpush.msra.mxu0 %v424
      %1117 = vmatpush.msra.mxu0 %v423
      %1118 = vmatpush.msra.mxu0 %v422
      %1119 = vmatpush.msra.mxu0 %v421
      %1120 = vmatpush.msra.mxu0 %v420
      %1121 = vmatpush.msra.mxu0 %v419
      %1122 = vmatpush.msra.mxu0 %v418
      %1123 = vmatpush.msra.mxu0 %v417
      %1124 = vmatmul.f32.gmra.mxu0 %v1106
      %v1125 = vpop.f32.mrf.mxu0
      %v1126 = vadd.f32 0.0, %v1125
      %1127 = vdwg.mxu0
      %v1128 = vadd.f32 %v1071, %v1126
      %vm1129 = vcmask 130048
      %1130 = vst.msk [vmem:[%s304] sm:$0xff] %vm1129, %v1128
      %p1131 = scmp.lt.s32.totalorder %s22, 1
      %s1132 = scalar_select %p1131, %s22, 1
      %s1133 = smul.addr %s1132, 8
      %s1134 = scalar_lea.vmem %s7, %s1133
      // Predicated region
      $region53: #{e3_block_forward.5} parent=47 // pred_check
        %p1135 = pneg %p204
      $region54: #{e3_block_forward.5} parent=47 // pred_check_branch
        %1137 = sbr.rel (%p1135) target = $region56
      $region55: #{e3_block_forward.5} parent=47 // pred_region
        _
      $region56: #{e3_block_forward.5} parent=47 // pred_fallthru
        _
    $region48: #{e3_block_forward.5} parent=5 // pred_fallthru
      _
    %p1138 = scmp.le.s32.totalorder 2, %s13
    // Predicated region
    $region57: #{e3_block_forward.5} parent=5 // pred_check
      %p1139 = pneg %p1138
    $region58: #{e3_block_forward.5} parent=5 // pred_check_branch
      %1141 = sbr.rel (%p1139) target = $region60
    $region59: #{e3_block_forward.5} parent=5 // pred_region
      %s1142 = ssub.s32 %s13, 2
      // Predicated region
      $region61: #{e3_block_forward.5} parent=59 // pred_check
        %p1143 = pneg %p210
      $region62: #{e3_block_forward.5} parent=59 // pred_check_branch
        %1145 = sbr.rel (%p1143) target = $region64
      $region63: #{e3_block_forward.5} parent=59 // pred_region
        %p1146 = scmp.lt.s32.totalorder %s24, 1
        %s1147 = scalar_select %p1146, %s24, 1
        %s1148 = smul.addr %s1147, 8
        %s1149 = scalar_lea.vmem %s7, %s1148
      $region64: #{e3_block_forward.5} parent=59 // pred_fallthru
        _
    $region60: #{e3_block_forward.5} parent=5 // pred_fallthru
      _
  $region6: #{e3_block_forward.5} parent=0 // loop_footer
    %s17 = sadd.s32 1, %s13
  $region7: #{e3_block_forward.5} parent=0 // loop_footer_branch
    %12 = sbr.rel target = $region3
  $region8: #{e3_block_forward.5} parent=0 // loop_exit
    _

// kernel: e3_block_forward.3
$region0: #{e3_block_forward.3}
  #allocation0 [shape = 'u32[]', space=smem, size = 0x4, offset = 0x4, fixed_abs, tag = 'smem constant byte address 0x4 - core index']
  #allocation1 [shape = 'u32[72,128]{1,0:T(1,128)}', space=vmem, size = 0x9000, scoped, tag = 'internal scratch']
  #allocation2 [shape = 'f32[1,1]{1,0:T(1,128)S(1)}', space=vmem, size = 0x200, scoped, tag = 'scoped memory for e3_block_forward.3']
  %s0 = inlined_call_operand.vmem [shape: f32[256,8], index: 0, kind: input, shape index: {}]
  %s1 = inlined_call_operand.vmem [shape: f32[32,32], index: 1, kind: input, shape index: {}]
  %s2 = inlined_call_operand.vmem [shape: f32[2,32], index: 2, kind: input, shape index: {}]
  %s3 = inlined_call_operand.vmem [shape: f32[1,32], index: 3, kind: input, shape index: {}]
  %s4 = inlined_call_operand.vmem [shape: f32[32,32], index: 4, kind: input, shape index: {}]
  %s5 = inlined_call_operand.vmem [shape: f32[1,32], index: 5, kind: input, shape index: {}]
  %s6 = inlined_call_operand.vmem [shape: f32[1,32], index: 6, kind: input, shape index: {}]
  %s7 = inlined_call_operand.<no memory space> [shape: f32[1,1], index: 7, kind: input, shape index: {}]
  %s8 = inlined_call_operand.vmem [shape: f32[2,32,16], index: 8, kind: output, shape index: {}]
  %s9 = sld [smem:[#allocation0]]
  $region69: #{e3_block_forward.3} parent=0
    _
  %s11 = ssub.s32 1, %s9
  %s12 = scalar_select 0, %s11, %s9
  %v13 = vstv %s7
  %14 = vst [vmem:[#allocation2] sm:$0x1] %v13
  loop: start=0, step=1, limit=6
  $region2: #{e3_block_forward.3} parent=0 // loop_pre_header
    _
  $region3: #{e3_block_forward.3} parent=0 // loop_header
    %s16 = sphi 0, %s20
    %p17 = scmp.ge.s32.totalorder %s16, 6
    %s23 = sphi 0, %s35
    %s24 = sphi 0, %s31
    %s25 = sphi 0, %s23
    %s26 = sphi 0, %s24
    %s27 = sphi 0, %s25
    %s28 = sphi 0, %s26
    %s42 = sphi 0, %s44
    %s45 = sphi 0, %s42
    %s46 = sphi 0, %s45
    %s62 = sphi 0, %s46
    %s66 = sphi 0, %s66
    %s68 = sphi 0, %s66
    %s69 = sphi 0, %s68
    %s83 = sphi 0, %s69
    %s87 = sphi 0, %s87
    %s89 = sphi 0, %s87
    %s90 = sphi 0, %s89
    %s104 = sphi 0, %s90
    %s108 = sphi 0, %s108
    %s110 = sphi 0, %s108
    %s111 = sphi 0, %s110
    %s125 = sphi 0, %s111
    %s129 = sphi 0, %s129
    %s131 = sphi 0, %s129
    %s132 = sphi 0, %s131
    %s146 = sphi 0, %s132
    %s150 = sphi 0, %s150
    %s152 = sphi 0, %s150
    %s153 = sphi 0, %s152
    %s167 = sphi 0, %s153
    %s171 = sphi 0, %s171
    %s173 = sphi 0, %s171
    %s174 = sphi 0, %s173
    %s188 = sphi 0, %s174
    %s192 = sphi 0, %s192
    %s194 = sphi 0, %s192
    %s195 = sphi 0, %s194
    %s209 = sphi 0, %s195
    %s215 = sphi 0, %s217
    %s218 = sphi 0, %s215
    %s219 = sphi 0, %s218
    %s235 = sphi 0, %s219
  $region4: #{e3_block_forward.3} parent=0 // loop_header_branch
    %19 = sbr.rel (%p17) target = $region8
  $region5: #{e3_block_forward.3} parent=0 // loop_body
    %s21 = ssub.s32 %s16, 1
    %s22 = ssub.s32 %s16, 2
    %s29 = sadd.s32 1, %s24
    %p30 = scmp.ge.s32.totalorder %s29, 2
    %s31 = scalar_select %p30, 0, %s29
    %s32 = sadd.s32 1, %s23
    %s33 = scalar_select %p30, %s32, %s23
    %p34 = scmp.ge.s32.totalorder %s33, 2
    %s35 = scalar_select %p34, 0, %s33
    %s36 = smul.u32 %s23, 2
    %s37 = sadd.s32 %s36, %s24
    %s38 = smul.u32 %s35, 2
    %s39 = sadd.s32 %s38, %s31
    %s40 = ssub.s32 %s37, %s39
    %p41 = scmp.eq.s32.totalorder %s40, 0
    %s43 = sadd.s32 %s42, 1
    %s44 = scalar_select %p41, %s42, %s43
    %p47 = pneg %p41
    %p48 = scmp.eq.s32.totalorder %s16, 3
    %p49 = por %p47, %p48
    %p50 = scmp.ne.s32.totalorder %s42, %s45
    %p51 = scmp.eq.s32.totalorder %s16, 0
    %p52 = por %p50, %p51
    %p53 = scmp.ne.s32.totalorder %s42, %s45
    %p54 = scmp.eq.s32.totalorder %s21, 3
    %p55 = por %p53, %p54
    %p56 = scmp.ne.s32.totalorder %s45, %s46
    %p57 = scmp.eq.s32.totalorder %s21, 0
    %p58 = por %p56, %p57
    %p59 = scmp.ne.s32.totalorder %s45, %s46
    %p60 = scmp.eq.s32.totalorder %s22, 3
    %p61 = por %p59, %p60
    %p63 = scmp.ne.s32.totalorder %s46, %s62
    %p64 = scmp.eq.s32.totalorder %s22, 0
    %p65 = por %p63, %p64
    %s67 = sadd.s32 %s66, 1
    %p70 = scmp.eq.s32.totalorder %s16, 3
    %p71 = scmp.ne.s32.totalorder %s66, %s68
    %p72 = scmp.eq.s32.totalorder %s16, 0
    %p73 = por %p71, %p72
    %p74 = scmp.ne.s32.totalorder %s66, %s68
    %p75 = scmp.eq.s32.totalorder %s21, 3
    %p76 = por %p74, %p75
    %p77 = scmp.ne.s32.totalorder %s68, %s69
    %p78 = scmp.eq.s32.totalorder %s21, 0
    %p79 = por %p77, %p78
    %p80 = scmp.ne.s32.totalorder %s68, %s69
    %p81 = scmp.eq.s32.totalorder %s22, 3
    %p82 = por %p80, %p81
    %p84 = scmp.ne.s32.totalorder %s69, %s83
    %p85 = scmp.eq.s32.totalorder %s22, 0
    %p86 = por %p84, %p85
    %s88 = sadd.s32 %s87, 1
    %p91 = scmp.eq.s32.totalorder %s16, 3
    %p92 = scmp.ne.s32.totalorder %s87, %s89
    %p93 = scmp.eq.s32.totalorder %s16, 0
    %p94 = por %p92, %p93
    %p95 = scmp.ne.s32.totalorder %s87, %s89
    %p96 = scmp.eq.s32.totalorder %s21, 3
    %p97 = por %p95, %p96
    %p98 = scmp.ne.s32.totalorder %s89, %s90
    %p99 = scmp.eq.s32.totalorder %s21, 0
    %p100 = por %p98, %p99
    %p101 = scmp.ne.s32.totalorder %s89, %s90
    %p102 = scmp.eq.s32.totalorder %s22, 3
    %p103 = por %p101, %p102
    %p105 = scmp.ne.s32.totalorder %s90, %s104
    %p106 = scmp.eq.s32.totalorder %s22, 0
    %p107 = por %p105, %p106
    %s109 = sadd.s32 %s108, 1
    %p112 = scmp.eq.s32.totalorder %s16, 3
    %p113 = scmp.ne.s32.totalorder %s108, %s110
    %p114 = scmp.eq.s32.totalorder %s16, 0
    %p115 = por %p113, %p114
    %p116 = scmp.ne.s32.totalorder %s108, %s110
    %p117 = scmp.eq.s32.totalorder %s21, 3
    %p118 = por %p116, %p117
    %p119 = scmp.ne.s32.totalorder %s110, %s111
    %p120 = scmp.eq.s32.totalorder %s21, 0
    %p121 = por %p119, %p120
    %p122 = scmp.ne.s32.totalorder %s110, %s111
    %p123 = scmp.eq.s32.totalorder %s22, 3
    %p124 = por %p122, %p123
    %p126 = scmp.ne.s32.totalorder %s111, %s125
    %p127 = scmp.eq.s32.totalorder %s22, 0
    %p128 = por %p126, %p127
    %s130 = sadd.s32 %s129, 1
    %p133 = scmp.eq.s32.totalorder %s16, 3
    %p134 = scmp.ne.s32.totalorder %s129, %s131
    %p135 = scmp.eq.s32.totalorder %s16, 0
    %p136 = por %p134, %p135
    %p137 = scmp.ne.s32.totalorder %s129, %s131
    %p138 = scmp.eq.s32.totalorder %s21, 3
    %p139 = por %p137, %p138
    %p140 = scmp.ne.s32.totalorder %s131, %s132
    %p141 = scmp.eq.s32.totalorder %s21, 0
    %p142 = por %p140, %p141
    %p143 = scmp.ne.s32.totalorder %s131, %s132
    %p144 = scmp.eq.s32.totalorder %s22, 3
    %p145 = por %p143, %p144
    %p147 = scmp.ne.s32.totalorder %s132, %s146
    %p148 = scmp.eq.s32.totalorder %s22, 0
    %p149 = por %p147, %p148
    %s151 = sadd.s32 %s150, 1
    %p154 = scmp.eq.s32.totalorder %s16, 3
    %p155 = scmp.ne.s32.totalorder %s150, %s152
    %p156 = scmp.eq.s32.totalorder %s16, 0
    %p157 = por %p155, %p156
    %p158 = scmp.ne.s32.totalorder %s150, %s152
    %p159 = scmp.eq.s32.totalorder %s21, 3
    %p160 = por %p158, %p159
    %p161 = scmp.ne.s32.totalorder %s152, %s153
    %p162 = scmp.eq.s32.totalorder %s21, 0
    %p163 = por %p161, %p162
    %p164 = scmp.ne.s32.totalorder %s152, %s153
    %p165 = scmp.eq.s32.totalorder %s22, 3
    %p166 = por %p164, %p165
    %p168 = scmp.ne.s32.totalorder %s153, %s167
    %p169 = scmp.eq.s32.totalorder %s22, 0
    %p170 = por %p168, %p169
    %s172 = sadd.s32 %s171, 1
    %p175 = scmp.eq.s32.totalorder %s16, 3
    %p176 = scmp.ne.s32.totalorder %s171, %s173
    %p177 = scmp.eq.s32.totalorder %s16, 0
    %p178 = por %p176, %p177
    %p179 = scmp.ne.s32.totalorder %s171, %s173
    %p180 = scmp.eq.s32.totalorder %s21, 3
    %p181 = por %p179, %p180
    %p182 = scmp.ne.s32.totalorder %s173, %s174
    %p183 = scmp.eq.s32.totalorder %s21, 0
    %p184 = por %p182, %p183
    %p185 = scmp.ne.s32.totalorder %s173, %s174
    %p186 = scmp.eq.s32.totalorder %s22, 3
    %p187 = por %p185, %p186
    %p189 = scmp.ne.s32.totalorder %s174, %s188
    %p190 = scmp.eq.s32.totalorder %s22, 0
    %p191 = por %p189, %p190
    %s193 = sadd.s32 %s192, 1
    %p196 = scmp.eq.s32.totalorder %s16, 3
    %p197 = scmp.ne.s32.totalorder %s192, %s194
    %p198 = scmp.eq.s32.totalorder %s16, 0
    %p199 = por %p197, %p198
    %p200 = scmp.ne.s32.totalorder %s192, %s194
    %p201 = scmp.eq.s32.totalorder %s21, 3
    %p202 = por %p200, %p201
    %p203 = scmp.ne.s32.totalorder %s194, %s195
    %p204 = scmp.eq.s32.totalorder %s21, 0
    %p205 = por %p203, %p204
    %p206 = scmp.ne.s32.totalorder %s194, %s195
    %p207 = scmp.eq.s32.totalorder %s22, 3
    %p208 = por %p206, %p207
    %p210 = scmp.ne.s32.totalorder %s195, %s209
    %p211 = scmp.eq.s32.totalorder %s22, 0
    %p212 = por %p210, %p211
    %s213 = ssub.s32 %s23, %s35
    %p214 = scmp.eq.s32.totalorder %s213, 0
    %s216 = sadd.s32 %s215, 1
    %s217 = scalar_select %p214, %s215, %s216
    %p220 = pneg %p214
    %p221 = scmp.eq.s32.totalorder %s16, 3
    %p222 = por %p220, %p221
    %p223 = scmp.ne.s32.totalorder %s215, %s218
    %p224 = scmp.eq.s32.totalorder %s16, 0
    %p225 = por %p223, %p224
    %p226 = scmp.ne.s32.totalorder %s215, %s218
    %p227 = scmp.eq.s32.totalorder %s21, 3
    %p228 = por %p226, %p227
    %p229 = scmp.ne.s32.totalorder %s218, %s219
    %p230 = scmp.eq.s32.totalorder %s21, 0
    %p231 = por %p229, %p230
    %p232 = scmp.ne.s32.totalorder %s218, %s219
    %p233 = scmp.eq.s32.totalorder %s22, 3
    %p234 = por %p232, %p233
    %p236 = scmp.ne.s32.totalorder %s219, %s235
    %p237 = scmp.eq.s32.totalorder %s22, 0
    %p238 = por %p236, %p237
    %p239 = scmp.le.s32.totalorder 1, %s16
    %p240 = scmp.lt.s32.totalorder %s16, 5
    %p241 = pnand %p239, %p240
    %p242 = pneg %p241
    // Predicated region
    $region9: #{e3_block_forward.3} parent=5 // pred_check
      _
    $region10: #{e3_block_forward.3} parent=5 // pred_check_branch
      %244 = sbr.rel (%p241) target = $region12
    $region11: #{e3_block_forward.3} parent=5 // pred_region
      %s245 = ssub.s32 %s16, 1
      // Predicated region
      $region13: #{e3_block_forward.3} parent=11 // pred_check
        %p246 = pneg %p79
      $region14: #{e3_block_forward.3} parent=11 // pred_check_branch
        %248 = sbr.rel (%p246) target = $region16
      $region15: #{e3_block_forward.3} parent=11 // pred_region
        _
      $region16: #{e3_block_forward.3} parent=11 // pred_fallthru
        _
      // Predicated region
      $region17: #{e3_block_forward.3} parent=11 // pred_check
        %p249 = pneg %p100
      $region18: #{e3_block_forward.3} parent=11 // pred_check_branch
        %251 = sbr.rel (%p249) target = $region20
      $region19: #{e3_block_forward.3} parent=11 // pred_region
        _
      $region20: #{e3_block_forward.3} parent=11 // pred_fallthru
        _
      // Predicated region
      $region21: #{e3_block_forward.3} parent=11 // pred_check
        %p252 = pneg %p121
      $region22: #{e3_block_forward.3} parent=11 // pred_check_branch
        %254 = sbr.rel (%p252) target = $region24
      $region23: #{e3_block_forward.3} parent=11 // pred_region
        _
      $region24: #{e3_block_forward.3} parent=11 // pred_fallthru
        _
      // Predicated region
      $region25: #{e3_block_forward.3} parent=11 // pred_check
        %p255 = pneg %p142
      $region26: #{e3_block_forward.3} parent=11 // pred_check_branch
        %257 = sbr.rel (%p255) target = $region28
      $region27: #{e3_block_forward.3} parent=11 // pred_region
        _
      $region28: #{e3_block_forward.3} parent=11 // pred_fallthru
        _
      // Predicated region
      $region29: #{e3_block_forward.3} parent=11 // pred_check
        %p258 = pneg %p163
      $region30: #{e3_block_forward.3} parent=11 // pred_check_branch
        %260 = sbr.rel (%p258) target = $region32
      $region31: #{e3_block_forward.3} parent=11 // pred_region
        _
      $region32: #{e3_block_forward.3} parent=11 // pred_fallthru
        _
      // Predicated region
      $region33: #{e3_block_forward.3} parent=11 // pred_check
        %p261 = pneg %p184
      $region34: #{e3_block_forward.3} parent=11 // pred_check_branch
        %263 = sbr.rel (%p261) target = $region36
      $region35: #{e3_block_forward.3} parent=11 // pred_region
        _
      $region36: #{e3_block_forward.3} parent=11 // pred_fallthru
        _
      // Predicated region
      $region37: #{e3_block_forward.3} parent=11 // pred_check
        %p264 = pneg %p205
      $region38: #{e3_block_forward.3} parent=11 // pred_check_branch
        %266 = sbr.rel (%p264) target = $region40
      $region39: #{e3_block_forward.3} parent=11 // pred_region
        _
      $region40: #{e3_block_forward.3} parent=11 // pred_fallthru
        _
    $region12: #{e3_block_forward.3} parent=5 // pred_fallthru
      _
    %p267 = scmp.lt.s32.totalorder %s16, 4
    // Predicated region
    $region41: #{e3_block_forward.3} parent=5 // pred_check
      %p268 = pneg %p267
    $region42: #{e3_block_forward.3} parent=5 // pred_check_branch
      %270 = sbr.rel (%p268) target = $region44
    $region43: #{e3_block_forward.3} parent=5 // pred_region
      // Predicated region
      $region45: #{e3_block_forward.3} parent=43 // pred_check
        %p271 = pneg %p52
      $region46: #{e3_block_forward.3} parent=43 // pred_check_branch
        %273 = sbr.rel (%p271) target = $region48
      $region47: #{e3_block_forward.3} parent=43 // pred_region
        %s274 = smul.u32 %s23, 2
        %s275 = sadd.s32 %s274, %s24
        %s276 = smul.u32 8, %s275
        %p277 = scmp.lt.s32.totalorder %s276, 31
        %s278 = scalar_select %p277, %s276, 31
        %s279 = smul.addr %s278, 8
        %s280 = scalar_lea.vmem %s0, %s279
        %s281 = smul.u32 %s23, 2
        %s282 = sadd.s32 %s281, %s24
        %s283 = smul.u32 8, %s282
      $region48: #{e3_block_forward.3} parent=43 // pred_fallthru
        _
    $region44: #{e3_block_forward.3} parent=5 // pred_fallthru
      _
    %p284 = scmp.le.s32.totalorder 1, %s16
    %p285 = scmp.lt.s32.totalorder %s16, 5
    %p286 = pnand %p284, %p285
    %p287 = pneg %p286
    // Predicated region
    $region49: #{e3_block_forward.3} parent=5 // pred_check
      _
    $region50: #{e3_block_forward.3} parent=5 // pred_check_branch
      %289 = sbr.rel (%p286) target = $region52
    $region51: #{e3_block_forward.3} parent=5 // pred_region
      %s290 = ssub.s32 %s16, 1
      %s291 = smul.u32 %s25, 2
      %s292 = sadd.s32 %s291, %s26
      %s293 = smul.u32 8, %s292
      %p294 = scmp.lt.s32.totalorder %s293, 31
      %s295 = scalar_select %p294, %s293, 31
      %s296 = smul.addr %s295, 8
      %s297 = scalar_lea.vmem %s0, %s296
      %p298 = pneg %p58
      %p299 = pneg %p55
      %p300 = pneg %p79
      %p301 = pneg %p76
      %p302 = pneg %p100
      %p303 = pneg %p97
      %p304 = pneg %p121
      %p305 = pneg %p118
      %p306 = pneg %p142
      %p307 = pneg %p139
      %p308 = pneg %p163
      %p309 = pneg %p160
      %p310 = pneg %p184
      %p311 = pneg %p181
      %p312 = pneg %p205
      %p313 = pneg %p202
      %p314 = pneg %p231
      %p315 = pneg %p228
      %p316 = scmp.lt.s32.totalorder %s25, 1
      %s317 = scalar_select %p316, %s25, 1
      %s318 = smul.addr %s317, 4
      %s319 = smul.addr %s318, 8
      %s320 = scalar_lea.vmem %s8, %s319
      %s321 = smul.u32 %s25, 2
      %s322 = sadd.s32 %s321, %s26
      %s323 = smul.u32 8, %s322
      %p324 = scmp.lt.s32.totalorder %s323, 31
      %s325 = scalar_select %p324, %s323, 31
      %s326 = smul.addr %s325, 8
      %s327 = scalar_lea.vmem %s0, %s326
      %s328 = smul.u32 %s25, 2
      %s329 = sadd.s32 %s328, %s26
      %s330 = smul.u32 8, %s329
      %p331 = scmp.lt.s32.totalorder %s25, 1
      %s332 = scalar_select %p331, %s25, 1
      %s333 = smul.addr %s332, 4
      %s334 = smul.addr %s333, 8
      %s335 = scalar_lea.vmem %s8, %s334
      %p336 = scmp.eq.s32.totalorder %s26, 0
      // Predicated region
      $region53: #{e3_block_forward.3} parent=51 // pred_check
        %p337 = pneg %p336
      $region54: #{e3_block_forward.3} parent=51 // pred_check_branch
        %339 = sbr.rel (%p337) target = $region56
      $region55: #{e3_block_forward.3} parent=51 // pred_region
        %vm340 = vcmask 130048
        %341 = vst.msk [vmem:[%s335] sm:$0xff] %vm340, 0.0
        %342 = vst.msk [vmem:[%s335 + $0x8] sm:$0xff] %vm340, 0.0
        %343 = vst.msk [vmem:[%s335 + $0x10] sm:$0xff] %vm340, 0.0
        %344 = vst.msk [vmem:[%s335 + $0x18] sm:$0xff] %vm340, 0.0
      $region56: #{e3_block_forward.3} parent=51 // pred_fallthru
        _
      %v345 = vld [vmem:[%s327] sm:$0xff]
      %v346 = vld [vmem:[%s327 + $0x8] sm:$0xff]
      %v347 = vld [vmem:[%s327 + $0x10] sm:$0xff]
      %v348 = vld [vmem:[%s327 + $0x18] sm:$0xff]
      %v349 = vld [vmem:[%s327 + $0x20] sm:$0xff]
      %v350 = vld [vmem:[%s327 + $0x28] sm:$0xff]
      %v351 = vld [vmem:[%s327 + $0x30] sm:$0xff]
      %v352 = vld [vmem:[%s327 + $0x38] sm:$0xff]
      %v353 = vcvt.f32.s32.to.zero.pseudo %v345
      %v354 = vcvt.f32.s32.to.zero.pseudo %v346
      %v355 = vcvt.f32.s32.to.zero.pseudo %v347
      %v356 = vcvt.f32.s32.to.zero.pseudo %v348
      %v357 = vcvt.f32.s32.to.zero.pseudo %v349
      %v358 = vcvt.f32.s32.to.zero.pseudo %v350
      %v359 = vcvt.f32.s32.to.zero.pseudo %v351
      %v360 = vcvt.f32.s32.to.zero.pseudo %v352
      %v361 = vlaneseq
      %v362 = vand.u32 %v361, 127
      %363 = vset.pattern.permute.xlu0 0
      %364 = vperm.xlu0 %363, %v353
      %v365 = vpop.permute.xlu0 %364
      %366 = vset.pattern.permute.xlu0 0
      %367 = vperm.xlu0 %366, %v354
      %v368 = vpop.permute.xlu0 %367
      %369 = vset.pattern.permute.xlu0 0
      %370 = vperm.xlu0 %369, %v355
      %v371 = vpop.permute.xlu0 %370
      %372 = vset.pattern.permute.xlu0 0
      %373 = vperm.xlu0 %372, %v356
      %v374 = vpop.permute.xlu0 %373
      %375 = vset.pattern.permute.xlu0 0
      %376 = vperm.xlu0 %375, %v357
      %v377 = vpop.permute.xlu0 %376
      %378 = vset.pattern.permute.xlu0 0
      %379 = vperm.xlu0 %378, %v358
      %v380 = vpop.permute.xlu0 %379
      %381 = vset.pattern.permute.xlu0 0
      %382 = vperm.xlu0 %381, %v359
      %v383 = vpop.permute.xlu0 %382
      %384 = vset.pattern.permute.xlu0 0
      %385 = vperm.xlu0 %384, %v360
      %v386 = vpop.permute.xlu0 %385
      %vm387 = vcmp.eq.s32.totalorder %v362, %v365
      %vm388 = vcmp.eq.s32.totalorder %v362, %v368
      %vm389 = vcmp.eq.s32.totalorder %v362, %v371
      %vm390 = vcmp.eq.s32.totalorder %v362, %v374
      %vm391 = vcmp.eq.s32.totalorder %v362, %v377
      %vm392 = vcmp.eq.s32.totalorder %v362, %v380
      %vm393 = vcmp.eq.s32.totalorder %v362, %v383
      %vm394 = vcmp.eq.s32.totalorder %v362, %v386
      %v395 = vadd.s32 %v353, 16
      %v396 = vadd.s32 %v354, 16
      %v397 = vadd.s32 %v355, 16
      %v398 = vadd.s32 %v356, 16
      %v399 = vadd.s32 %v357, 16
      %v400 = vadd.s32 %v358, 16
      %v401 = vadd.s32 %v359, 16
      %v402 = vadd.s32 %v360, 16
      %403 = vset.pattern.permute.xlu0 1
      %404 = vperm.xlu0 %403, %v395
      %v405 = vpop.permute.xlu0 %404
      %406 = vset.pattern.permute.xlu0 1
      %407 = vperm.xlu0 %406, %v396
      %v408 = vpop.permute.xlu0 %407
      %409 = vset.pattern.permute.xlu0 1
      %410 = vperm.xlu0 %409, %v397
      %v411 = vpop.permute.xlu0 %410
      %412 = vset.pattern.permute.xlu0 1
      %413 = vperm.xlu0 %412, %v398
      %v414 = vpop.permute.xlu0 %413
      %415 = vset.pattern.permute.xlu0 1
      %416 = vperm.xlu0 %415, %v399
      %v417 = vpop.permute.xlu0 %416
      %418 = vset.pattern.permute.xlu0 1
      %419 = vperm.xlu0 %418, %v400
      %v420 = vpop.permute.xlu0 %419
      %421 = vset.pattern.permute.xlu0 1
      %422 = vperm.xlu0 %421, %v401
      %v423 = vpop.permute.xlu0 %422
      %424 = vset.pattern.permute.xlu0 1
      %425 = vperm.xlu0 %424, %v402
      %v426 = vpop.permute.xlu0 %425
      %vm427 = vcmp.eq.s32.totalorder %v362, %v405
      %vm428 = vcmp.eq.s32.totalorder %v362, %v408
      %vm429 = vcmp.eq.s32.totalorder %v362, %v411
      %vm430 = vcmp.eq.s32.totalorder %v362, %v414
      %vm431 = vcmp.eq.s32.totalorder %v362, %v417
      %vm432 = vcmp.eq.s32.totalorder %v362, %v420
      %vm433 = vcmp.eq.s32.totalorder %v362, %v423
      %vm434 = vcmp.eq.s32.totalorder %v362, %v426
      %vm435 = vmor %vm387, %vm427
      %vm436 = vmor %vm388, %vm428
      %vm437 = vmor %vm389, %vm429
      %vm438 = vmor %vm390, %vm430
      %vm439 = vmor %vm391, %vm431
      %vm440 = vmor %vm392, %vm432
      %vm441 = vmor %vm393, %vm433
      %vm442 = vmor %vm394, %vm434
      %v443 = vsel %vm435, 1, 0
      %v444 = vsel %vm436, 1, 0
      %v445 = vsel %vm437, 1, 0
      %v446 = vsel %vm438, 1, 0
      %v447 = vsel %vm439, 1, 0
      %v448 = vsel %vm440, 1, 0
      %v449 = vsel %vm441, 1, 0
      %v450 = vsel %vm442, 1, 0
      %v451 = vcvt.s32.f32 %v443
      %v452 = vcvt.s32.f32 %v444
      %v453 = vcvt.s32.f32 %v445
      %v454 = vcvt.s32.f32 %v446
      %v455 = vcvt.s32.f32 %v447
      %v456 = vcvt.s32.f32 %v448
      %v457 = vcvt.s32.f32 %v449
      %v458 = vcvt.s32.f32 %v450
      %v459 = vld [vmem:[%s1] sm:$0xff]
      %v460 = vld [vmem:[%s1 + $0x8] sm:$0xff]
      %v461 = vld [vmem:[%s1 + $0x10] sm:$0xff]
      %v462 = vld [vmem:[%s1 + $0x18] sm:$0xff]
      %v463 = vld [vmem:[%s2] sm:$0x1]
      %465 = vset.pattern.permute.xlu0 3
      %466 = vperm.xlu0 %465, %v345
      %v467 = vpop.permute.xlu0 %466
      %470 = vset.pattern.permute.xlu0 3
      %471 = vperm.xlu0 %470, %v346
      %v472 = vpop.permute.xlu0 %471
      %475 = vset.pattern.permute.xlu0 3
      %476 = vperm.xlu0 %475, %v347
      %v477 = vpop.permute.xlu0 %476
      %480 = vset.pattern.permute.xlu0 3
      %481 = vperm.xlu0 %480, %v348
      %v482 = vpop.permute.xlu0 %481
      %485 = vset.pattern.permute.xlu0 3
      %486 = vperm.xlu0 %485, %v349
      %v487 = vpop.permute.xlu0 %486
      %490 = vset.pattern.permute.xlu0 3
      %491 = vperm.xlu0 %490, %v350
      %v492 = vpop.permute.xlu0 %491
      %495 = vset.pattern.permute.xlu0 3
      %496 = vperm.xlu0 %495, %v351
      %v497 = vpop.permute.xlu0 %496
      %500 = vset.pattern.permute.xlu0 3
      %501 = vperm.xlu0 %500, %v352
      %v502 = vpop.permute.xlu0 %501
      %v504 = vperm.slane %v463, 0
      %v505 = vmul.f32 %v467, %v504
      %v506 = vmul.f32 %v472, %v504
      %v507 = vmul.f32 %v477, %v504
      %v508 = vmul.f32 %v482, %v504
      %v509 = vmul.f32 %v487, %v504
      %v510 = vmul.f32 %v492, %v504
      %v511 = vmul.f32 %v497, %v504
      %v512 = vmul.f32 %v502, %v504
      %vm513 = vcmask 261120
      %v515 = vsel %vm513, %v451, 0
      %v518 = vsel %vm513, %v452, 0
      %v521 = vsel %vm513, %v453, 0
      %v524 = vsel %vm513, %v454, 0
      %v527 = vsel %vm513, %v455, 0
      %v530 = vsel %vm513, %v456, 0
      %v533 = vsel %vm513, %v457, 0
      %v536 = vsel %vm513, %v458, 0
      %538 = vmatpush.msra.mxu0 0.0
      %539 = vmatpush.msra.mxu0 0.0
      %540 = vmatpush.msra.mxu0 0.0
      %541 = vmatpush.msra.mxu0 0.0
      %542 = vmatpush.msra.mxu0 0.0
      %543 = vmatpush.msra.mxu0 0.0
      %544 = vmatpush.msra.mxu0 0.0
      %545 = vmatpush.msra.mxu0 0.0
      %546 = vmatpush.msra.mxu0 0.0
      %547 = vmatpush.msra.mxu0 0.0
      %548 = vmatpush.msra.mxu0 0.0
      %549 = vmatpush.msra.mxu0 0.0
      %550 = vmatpush.msra.mxu0 %v462
      %551 = vmatpush.msra.mxu0 %v461
      %552 = vmatpush.msra.mxu0 %v460
      %553 = vmatpush.msra.mxu0 %v459
      %554 = vmatmul.f32.gmra.mxu0 %v515
      %v555 = vpop.f32.mrf.mxu0
      %v556 = vadd.f32 %v505, %v555
      %557 = vmatmul.f32.gmra.mxu0 %v518
      %v558 = vpop.f32.mrf.mxu0
      %v559 = vadd.f32 %v506, %v558
      %560 = vmatmul.f32.gmra.mxu0 %v521
      %v561 = vpop.f32.mrf.mxu0
      %v562 = vadd.f32 %v507, %v561
      %563 = vmatmul.f32.gmra.mxu0 %v524
      %v564 = vpop.f32.mrf.mxu0
      %v565 = vadd.f32 %v508, %v564
      %566 = vmatmul.f32.gmra.mxu0 %v527
      %v567 = vpop.f32.mrf.mxu0
      %v568 = vadd.f32 %v509, %v567
      %569 = vmatmul.f32.gmra.mxu0 %v530
      %v570 = vpop.f32.mrf.mxu0
      %v571 = vadd.f32 %v510, %v570
      %572 = vmatmul.f32.gmra.mxu0 %v533
      %v573 = vpop.f32.mrf.mxu0
      %v574 = vadd.f32 %v511, %v573
      %575 = vmatmul.f32.gmra.mxu0 %v536
      %v576 = vpop.f32.mrf.mxu0
      %v577 = vadd.f32 %v512, %v576
      %578 = vdwg.mxu0
      %v579 = vld [vmem:[%s2 + $0x1] sm:$0x1]
      %580 = vset.pattern.permute.xlu0 4
      %581 = vperm.xlu0 %580, %v345
      %v582 = vpop.permute.xlu0 %581
      %584 = vset.pattern.permute.xlu0 4
      %585 = vperm.xlu0 %584, %v346
      %v586 = vpop.permute.xlu0 %585
      %588 = vset.pattern.permute.xlu0 4
      %589 = vperm.xlu0 %588, %v347
      %v590 = vpop.permute.xlu0 %589
      %592 = vset.pattern.permute.xlu0 4
      %593 = vperm.xlu0 %592, %v348
      %v594 = vpop.permute.xlu0 %593
      %596 = vset.pattern.permute.xlu0 4
      %597 = vperm.xlu0 %596, %v349
      %v598 = vpop.permute.xlu0 %597
      %600 = vset.pattern.permute.xlu0 4
      %601 = vperm.xlu0 %600, %v350
      %v602 = vpop.permute.xlu0 %601
      %604 = vset.pattern.permute.xlu0 4
      %605 = vperm.xlu0 %604, %v351
      %v606 = vpop.permute.xlu0 %605
      %608 = vset.pattern.permute.xlu0 4
      %609 = vperm.xlu0 %608, %v352
      %v610 = vpop.permute.xlu0 %609
      %v612 = vperm.slane %v579, 0
      %v613 = vmul.f32 %v582, %v612
      %v614 = vmul.f32 %v586, %v612
      %v615 = vmul.f32 %v590, %v612
      %v616 = vmul.f32 %v594, %v612
      %v617 = vmul.f32 %v598, %v612
      %v618 = vmul.f32 %v602, %v612
      %v619 = vmul.f32 %v606, %v612
      %v620 = vmul.f32 %v610, %v612
      %v621 = vadd.f32 %v556, %v613
      %v622 = vadd.f32 %v559, %v614
      %v623 = vadd.f32 %v562, %v615
      %v624 = vadd.f32 %v565, %v616
      %v625 = vadd.f32 %v568, %v617
      %v626 = vadd.f32 %v571, %v618
      %v627 = vadd.f32 %v574, %v619
      %v628 = vadd.f32 %v577, %v620
      %v629 = vld [vmem:[%s3] sm:$0x1]
      %v631 = vperm.slane %v629, 0
      %v633 = vadd.f32 %v621, %v631
      %v634 = vadd.f32 %v622, %v631
      %v635 = vadd.f32 %v623, %v631
      %v636 = vadd.f32 %v624, %v631
      %v637 = vadd.f32 %v625, %v631
      %v638 = vadd.f32 %v626, %v631
      %v639 = vadd.f32 %v627, %v631
      %v640 = vadd.f32 %v628, %v631
      %v641 = vxor.u32 %v633, 2147483648
      %v642 = vxor.u32 %v634, 2147483648
      %v643 = vxor.u32 %v635, 2147483648
      %v644 = vxor.u32 %v636, 2147483648
      %v645 = vxor.u32 %v637, 2147483648
      %v646 = vxor.u32 %v638, 2147483648
      %v647 = vxor.u32 %v639, 2147483648
      %v648 = vxor.u32 %v640, 2147483648
      %v649 = vmul.f32 %v641, 1.442695
      %v650 = vpow.pop %v649
      %v651 = vmul.f32 %v642, 1.442695
      %v652 = vpow.pop %v651
      %v653 = vmul.f32 %v643, 1.442695
      %v654 = vpow.pop %v653
      %v655 = vmul.f32 %v644, 1.442695
      %v656 = vpow.pop %v655
      %v657 = vmul.f32 %v645, 1.442695
      %v658 = vpow.pop %v657
      %v659 = vmul.f32 %v646, 1.442695
      %v660 = vpow.pop %v659
      %v661 = vmul.f32 %v647, 1.442695
      %v662 = vpow.pop %v661
      %v663 = vmul.f32 %v648, 1.442695
      %v664 = vpow.pop %v663
      %v665 = vadd.f32 %v650, 1.0
      %v666 = vadd.f32 %v652, 1.0
      %v667 = vadd.f32 %v654, 1.0
      %v668 = vadd.f32 %v656, 1.0
      %v669 = vadd.f32 %v658, 1.0
      %v670 = vadd.f32 %v660, 1.0
      %v671 = vadd.f32 %v662, 1.0
      %v672 = vadd.f32 %v664, 1.0
      %v673 = vrcp.pop %v665
      %v674 = vmul.f32 %v665, %v673
      %v675 = vsub.f32 1.0, %v674
      %v676 = vmul.f32 %v673, %v675
      %v677 = vadd.f32 %v673, %v676
      %vm678 = vweird.f32 %v665
      %vm679 = vweird.f32 %v673
      %vm680 = vmor %vm678, %vm679
      %v681 = vsel %vm680, %v673, %v677
      %v682 = vand.u32 2147483647, %v665
      %vm683 = vcmp.eq.f32.partialorder %v682, 8.507059e+37
      %v684 = vand.u32 %v665, 2147483648
      %v685 = vor.u32 1.1754944e-38, %v684
      %v686 = vsel %vm683, %v685, %v681
      %v687 = vmul.f32 1.0, %v686
      %v688 = vrcp.pop %v666
      %v689 = vmul.f32 %v666, %v688
      %v690 = vsub.f32 1.0, %v689
      %v691 = vmul.f32 %v688, %v690
      %v692 = vadd.f32 %v688, %v691
      %vm693 = vweird.f32 %v666
      %vm694 = vweird.f32 %v688
      %vm695 = vmor %vm693, %vm694
      %v696 = vsel %vm695, %v688, %v692
      %v697 = vand.u32 2147483647, %v666
      %vm698 = vcmp.eq.f32.partialorder %v697, 8.507059e+37
      %v699 = vand.u32 %v666, 2147483648
      %v700 = vor.u32 1.1754944e-38, %v699
      %v701 = vsel %vm698, %v700, %v696
      %v702 = vmul.f32 1.0, %v701
      %v703 = vrcp.pop %v667
      %v704 = vmul.f32 %v667, %v703
      %v705 = vsub.f32 1.0, %v704
      %v706 = vmul.f32 %v703, %v705
      %v707 = vadd.f32 %v703, %v706
      %vm708 = vweird.f32 %v667
      %vm709 = vweird.f32 %v703
      %vm710 = vmor %vm708, %vm709
      %v711 = vsel %vm710, %v703, %v707
      %v712 = vand.u32 2147483647, %v667
      %vm713 = vcmp.eq.f32.partialorder %v712, 8.507059e+37
      %v714 = vand.u32 %v667, 2147483648
      %v715 = vor.u32 1.1754944e-38, %v714
      %v716 = vsel %vm713, %v715, %v711
      %v717 = vmul.f32 1.0, %v716
      %v718 = vrcp.pop %v668
      %v719 = vmul.f32 %v668, %v718
      %v720 = vsub.f32 1.0, %v719
      %v721 = vmul.f32 %v718, %v720
      %v722 = vadd.f32 %v718, %v721
      %vm723 = vweird.f32 %v668
      %vm724 = vweird.f32 %v718
      %vm725 = vmor %vm723, %vm724
      %v726 = vsel %vm725, %v718, %v722
      %v727 = vand.u32 2147483647, %v668
      %vm728 = vcmp.eq.f32.partialorder %v727, 8.507059e+37
      %v729 = vand.u32 %v668, 2147483648
      %v730 = vor.u32 1.1754944e-38, %v729
      %v731 = vsel %vm728, %v730, %v726
      %v732 = vmul.f32 1.0, %v731
      %v733 = vrcp.pop %v669
      %v734 = vmul.f32 %v669, %v733
      %v735 = vsub.f32 1.0, %v734
      %v736 = vmul.f32 %v733, %v735
      %v737 = vadd.f32 %v733, %v736
      %vm738 = vweird.f32 %v669
      %vm739 = vweird.f32 %v733
      %vm740 = vmor %vm738, %vm739
      %v741 = vsel %vm740, %v733, %v737
      %v742 = vand.u32 2147483647, %v669
      %vm743 = vcmp.eq.f32.partialorder %v742, 8.507059e+37
      %v744 = vand.u32 %v669, 2147483648
      %v745 = vor.u32 1.1754944e-38, %v744
      %v746 = vsel %vm743, %v745, %v741
      %v747 = vmul.f32 1.0, %v746
      %v748 = vrcp.pop %v670
      %v749 = vmul.f32 %v670, %v748
      %v750 = vsub.f32 1.0, %v749
      %v751 = vmul.f32 %v748, %v750
      %v752 = vadd.f32 %v748, %v751
      %vm753 = vweird.f32 %v670
      %vm754 = vweird.f32 %v748
      %vm755 = vmor %vm753, %vm754
      %v756 = vsel %vm755, %v748, %v752
      %v757 = vand.u32 2147483647, %v670
      %vm758 = vcmp.eq.f32.partialorder %v757, 8.507059e+37
      %v759 = vand.u32 %v670, 2147483648
      %v760 = vor.u32 1.1754944e-38, %v759
      %v761 = vsel %vm758, %v760, %v756
      %v762 = vmul.f32 1.0, %v761
      %v763 = vrcp.pop %v671
      %v764 = vmul.f32 %v671, %v763
      %v765 = vsub.f32 1.0, %v764
      %v766 = vmul.f32 %v763, %v765
      %v767 = vadd.f32 %v763, %v766
      %vm768 = vweird.f32 %v671
      %vm769 = vweird.f32 %v763
      %vm770 = vmor %vm768, %vm769
      %v771 = vsel %vm770, %v763, %v767
      %v772 = vand.u32 2147483647, %v671
      %vm773 = vcmp.eq.f32.partialorder %v772, 8.507059e+37
      %v774 = vand.u32 %v671, 2147483648
      %v775 = vor.u32 1.1754944e-38, %v774
      %v776 = vsel %vm773, %v775, %v771
      %v777 = vmul.f32 1.0, %v776
      %v778 = vrcp.pop %v672
      %v779 = vmul.f32 %v672, %v778
      %v780 = vsub.f32 1.0, %v779
      %v781 = vmul.f32 %v778, %v780
      %v782 = vadd.f32 %v778, %v781
      %vm783 = vweird.f32 %v672
      %vm784 = vweird.f32 %v778
      %vm785 = vmor %vm783, %vm784
      %v786 = vsel %vm785, %v778, %v782
      %v787 = vand.u32 2147483647, %v672
      %vm788 = vcmp.eq.f32.partialorder %v787, 8.507059e+37
      %v789 = vand.u32 %v672, 2147483648
      %v790 = vor.u32 1.1754944e-38, %v789
      %v791 = vsel %vm788, %v790, %v786
      %v792 = vmul.f32 1.0, %v791
      %v793 = vmul.f32 %v633, %v687
      %v794 = vmul.f32 %v634, %v702
      %v795 = vmul.f32 %v635, %v717
      %v796 = vmul.f32 %v636, %v732
      %v797 = vmul.f32 %v637, %v747
      %v798 = vmul.f32 %v638, %v762
      %v799 = vmul.f32 %v639, %v777
      %v800 = vmul.f32 %v640, %v792
      %v801 = vld [vmem:[%s4] sm:$0xff]
      %v802 = vld [vmem:[%s4 + $0x8] sm:$0xff]
      %v803 = vld [vmem:[%s4 + $0x10] sm:$0xff]
      %v804 = vld [vmem:[%s4 + $0x18] sm:$0xff]
      %v805 = vld [vmem:[%s5] sm:$0x1]
      %v807 = vperm.slane %v805, 0
      %v810 = vsel %vm513, %v793, 0
      %v813 = vsel %vm513, %v794, 0
      %v816 = vsel %vm513, %v795, 0
      %v819 = vsel %vm513, %v796, 0
      %v822 = vsel %vm513, %v797, 0
      %v825 = vsel %vm513, %v798, 0
      %v828 = vsel %vm513, %v799, 0
      %v831 = vsel %vm513, %v800, 0
      %833 = vmatpush.msra.mxu0 0.0
      %834 = vmatpush.msra.mxu0 0.0
      %835 = vmatpush.msra.mxu0 0.0
      %836 = vmatpush.msra.mxu0 0.0
      %837 = vmatpush.msra.mxu0 0.0
      %838 = vmatpush.msra.mxu0 0.0
      %839 = vmatpush.msra.mxu0 0.0
      %840 = vmatpush.msra.mxu0 0.0
      %841 = vmatpush.msra.mxu0 0.0
      %842 = vmatpush.msra.mxu0 0.0
      %843 = vmatpush.msra.mxu0 0.0
      %844 = vmatpush.msra.mxu0 0.0
      %845 = vmatpush.msra.mxu0 %v804
      %846 = vmatpush.msra.mxu0 %v803
      %847 = vmatpush.msra.mxu0 %v802
      %848 = vmatpush.msra.mxu0 %v801
      %849 = vmatmul.f32.gmra.mxu0 %v810
      %v850 = vpop.f32.mrf.mxu0
      %v851 = vadd.f32 %v807, %v850
      %852 = vmatmul.f32.gmra.mxu0 %v813
      %v853 = vpop.f32.mrf.mxu0
      %v854 = vadd.f32 %v807, %v853
      %855 = vmatmul.f32.gmra.mxu0 %v816
      %v856 = vpop.f32.mrf.mxu0
      %v857 = vadd.f32 %v807, %v856
      %858 = vmatmul.f32.gmra.mxu0 %v819
      %v859 = vpop.f32.mrf.mxu0
      %v860 = vadd.f32 %v807, %v859
      %861 = vmatmul.f32.gmra.mxu0 %v822
      %v862 = vpop.f32.mrf.mxu0
      %v863 = vadd.f32 %v807, %v862
      %864 = vmatmul.f32.gmra.mxu0 %v825
      %v865 = vpop.f32.mrf.mxu0
      %v866 = vadd.f32 %v807, %v865
      %867 = vmatmul.f32.gmra.mxu0 %v828
      %v868 = vpop.f32.mrf.mxu0
      %v869 = vadd.f32 %v807, %v868
      %870 = vmatmul.f32.gmra.mxu0 %v831
      %v871 = vpop.f32.mrf.mxu0
      %v872 = vadd.f32 %v807, %v871
      %873 = vdwg.mxu0
      %v874 = vxor.u32 %v851, 2147483648
      %v875 = vxor.u32 %v854, 2147483648
      %v876 = vxor.u32 %v857, 2147483648
      %v877 = vxor.u32 %v860, 2147483648
      %v878 = vxor.u32 %v863, 2147483648
      %v879 = vxor.u32 %v866, 2147483648
      %v880 = vxor.u32 %v869, 2147483648
      %v881 = vxor.u32 %v872, 2147483648
      %v882 = vmul.f32 %v874, 1.442695
      %v883 = vpow.pop %v882
      %v884 = vmul.f32 %v875, 1.442695
      %v885 = vpow.pop %v884
      %v886 = vmul.f32 %v876, 1.442695
      %v887 = vpow.pop %v886
      %v888 = vmul.f32 %v877, 1.442695
      %v889 = vpow.pop %v888
      %v890 = vmul.f32 %v878, 1.442695
      %v891 = vpow.pop %v890
      %v892 = vmul.f32 %v879, 1.442695
      %v893 = vpow.pop %v892
      %v894 = vmul.f32 %v880, 1.442695
      %v895 = vpow.pop %v894
      %v896 = vmul.f32 %v881, 1.442695
      %v897 = vpow.pop %v896
      %v898 = vadd.f32 %v883, 1.0
      %v899 = vadd.f32 %v885, 1.0
      %v900 = vadd.f32 %v887, 1.0
      %v901 = vadd.f32 %v889, 1.0
      %v902 = vadd.f32 %v891, 1.0
      %v903 = vadd.f32 %v893, 1.0
      %v904 = vadd.f32 %v895, 1.0
      %v905 = vadd.f32 %v897, 1.0
      %v906 = vrcp.pop %v898
      %v907 = vmul.f32 %v898, %v906
      %v908 = vsub.f32 1.0, %v907
      %v909 = vmul.f32 %v906, %v908
      %v910 = vadd.f32 %v906, %v909
      %vm911 = vweird.f32 %v898
      %vm912 = vweird.f32 %v906
      %vm913 = vmor %vm911, %vm912
      %v914 = vsel %vm913, %v906, %v910
      %v915 = vand.u32 2147483647, %v898
      %vm916 = vcmp.eq.f32.partialorder %v915, 8.507059e+37
      %v917 = vand.u32 %v898, 2147483648
      %v918 = vor.u32 1.1754944e-38, %v917
      %v919 = vsel %vm916, %v918, %v914
      %v920 = vmul.f32 1.0, %v919
      %v921 = vrcp.pop %v899
      %v922 = vmul.f32 %v899, %v921
      %v923 = vsub.f32 1.0, %v922
      %v924 = vmul.f32 %v921, %v923
      %v925 = vadd.f32 %v921, %v924
      %vm926 = vweird.f32 %v899
      %vm927 = vweird.f32 %v921
      %vm928 = vmor %vm926, %vm927
      %v929 = vsel %vm928, %v921, %v925
      %v930 = vand.u32 2147483647, %v899
      %vm931 = vcmp.eq.f32.partialorder %v930, 8.507059e+37
      %v932 = vand.u32 %v899, 2147483648
      %v933 = vor.u32 1.1754944e-38, %v932
      %v934 = vsel %vm931, %v933, %v929
      %v935 = vmul.f32 1.0, %v934
      %v936 = vrcp.pop %v900
      %v937 = vmul.f32 %v900, %v936
      %v938 = vsub.f32 1.0, %v937
      %v939 = vmul.f32 %v936, %v938
      %v940 = vadd.f32 %v936, %v939
      %vm941 = vweird.f32 %v900
      %vm942 = vweird.f32 %v936
      %vm943 = vmor %vm941, %vm942
      %v944 = vsel %vm943, %v936, %v940
      %v945 = vand.u32 2147483647, %v900
      %vm946 = vcmp.eq.f32.partialorder %v945, 8.507059e+37
      %v947 = vand.u32 %v900, 2147483648
      %v948 = vor.u32 1.1754944e-38, %v947
      %v949 = vsel %vm946, %v948, %v944
      %v950 = vmul.f32 1.0, %v949
      %v951 = vrcp.pop %v901
      %v952 = vmul.f32 %v901, %v951
      %v953 = vsub.f32 1.0, %v952
      %v954 = vmul.f32 %v951, %v953
      %v955 = vadd.f32 %v951, %v954
      %vm956 = vweird.f32 %v901
      %vm957 = vweird.f32 %v951
      %vm958 = vmor %vm956, %vm957
      %v959 = vsel %vm958, %v951, %v955
      %v960 = vand.u32 2147483647, %v901
      %vm961 = vcmp.eq.f32.partialorder %v960, 8.507059e+37
      %v962 = vand.u32 %v901, 2147483648
      %v963 = vor.u32 1.1754944e-38, %v962
      %v964 = vsel %vm961, %v963, %v959
      %v965 = vmul.f32 1.0, %v964
      %v966 = vrcp.pop %v902
      %v967 = vmul.f32 %v902, %v966
      %v968 = vsub.f32 1.0, %v967
      %v969 = vmul.f32 %v966, %v968
      %v970 = vadd.f32 %v966, %v969
      %vm971 = vweird.f32 %v902
      %vm972 = vweird.f32 %v966
      %vm973 = vmor %vm971, %vm972
      %v974 = vsel %vm973, %v966, %v970
      %v975 = vand.u32 2147483647, %v902
      %vm976 = vcmp.eq.f32.partialorder %v975, 8.507059e+37
      %v977 = vand.u32 %v902, 2147483648
      %v978 = vor.u32 1.1754944e-38, %v977
      %v979 = vsel %vm976, %v978, %v974
      %v980 = vmul.f32 1.0, %v979
      %v981 = vrcp.pop %v903
      %v982 = vmul.f32 %v903, %v981
      %v983 = vsub.f32 1.0, %v982
      %v984 = vmul.f32 %v981, %v983
      %v985 = vadd.f32 %v981, %v984
      %vm986 = vweird.f32 %v903
      %vm987 = vweird.f32 %v981
      %vm988 = vmor %vm986, %vm987
      %v989 = vsel %vm988, %v981, %v985
      %v990 = vand.u32 2147483647, %v903
      %vm991 = vcmp.eq.f32.partialorder %v990, 8.507059e+37
      %v992 = vand.u32 %v903, 2147483648
      %v993 = vor.u32 1.1754944e-38, %v992
      %v994 = vsel %vm991, %v993, %v989
      %v995 = vmul.f32 1.0, %v994
      %v996 = vrcp.pop %v904
      %v997 = vmul.f32 %v904, %v996
      %v998 = vsub.f32 1.0, %v997
      %v999 = vmul.f32 %v996, %v998
      %v1000 = vadd.f32 %v996, %v999
      %vm1001 = vweird.f32 %v904
      %vm1002 = vweird.f32 %v996
      %vm1003 = vmor %vm1001, %vm1002
      %v1004 = vsel %vm1003, %v996, %v1000
      %v1005 = vand.u32 2147483647, %v904
      %vm1006 = vcmp.eq.f32.partialorder %v1005, 8.507059e+37
      %v1007 = vand.u32 %v904, 2147483648
      %v1008 = vor.u32 1.1754944e-38, %v1007
      %v1009 = vsel %vm1006, %v1008, %v1004
      %v1010 = vmul.f32 1.0, %v1009
      %v1011 = vrcp.pop %v905
      %v1012 = vmul.f32 %v905, %v1011
      %v1013 = vsub.f32 1.0, %v1012
      %v1014 = vmul.f32 %v1011, %v1013
      %v1015 = vadd.f32 %v1011, %v1014
      %vm1016 = vweird.f32 %v905
      %vm1017 = vweird.f32 %v1011
      %vm1018 = vmor %vm1016, %vm1017
      %v1019 = vsel %vm1018, %v1011, %v1015
      %v1020 = vand.u32 2147483647, %v905
      %vm1021 = vcmp.eq.f32.partialorder %v1020, 8.507059e+37
      %v1022 = vand.u32 %v905, 2147483648
      %v1023 = vor.u32 1.1754944e-38, %v1022
      %v1024 = vsel %vm1021, %v1023, %v1019
      %v1025 = vmul.f32 1.0, %v1024
      %v1026 = vmul.f32 %v851, %v920
      %v1027 = vmul.f32 %v854, %v935
      %v1028 = vmul.f32 %v857, %v950
      %v1029 = vmul.f32 %v860, %v965
      %v1030 = vmul.f32 %v863, %v980
      %v1031 = vmul.f32 %v866, %v995
      %v1032 = vmul.f32 %v869, %v1010
      %v1033 = vmul.f32 %v872, %v1025
      %v1034 = vld [vmem:[%s6] sm:$0x1]
      %v1036 = vperm.slane %v1034, 0
      %v1038 = vmul.f32 %v1026, %v1036
      %v1039 = vmul.f32 %v1027, %v1036
      %v1040 = vmul.f32 %v1028, %v1036
      %v1041 = vmul.f32 %v1029, %v1036
      %v1042 = vmul.f32 %v1030, %v1036
      %v1043 = vmul.f32 %v1031, %v1036
      %v1044 = vmul.f32 %v1032, %v1036
      %v1045 = vmul.f32 %v1033, %v1036
      %v1046 = vsel %vm513, %v1038, 0.0
      %1047 = vadd.xlane.f32.xlu0 %v1046
      %v1048 = vpop.xlane.xlu0 %1047
      %v1049 = vsel %vm513, %v1039, 0.0
      %1050 = vadd.xlane.f32.xlu0 %v1049
      %v1051 = vpop.xlane.xlu0 %1050
      %v1052 = vsel %vm513, %v1040, 0.0
      %1053 = vadd.xlane.f32.xlu0 %v1052
      %v1054 = vpop.xlane.xlu0 %1053
      %v1055 = vsel %vm513, %v1041, 0.0
      %1056 = vadd.xlane.f32.xlu0 %v1055
      %v1057 = vpop.xlane.xlu0 %1056
      %v1058 = vsel %vm513, %v1042, 0.0
      %1059 = vadd.xlane.f32.xlu0 %v1058
      %v1060 = vpop.xlane.xlu0 %1059
      %v1061 = vsel %vm513, %v1043, 0.0
      %1062 = vadd.xlane.f32.xlu0 %v1061
      %v1063 = vpop.xlane.xlu0 %1062
      %v1064 = vsel %vm513, %v1044, 0.0
      %1065 = vadd.xlane.f32.xlu0 %v1064
      %v1066 = vpop.xlane.xlu0 %1065
      %v1067 = vsel %vm513, %v1045, 0.0
      %1068 = vadd.xlane.f32.xlu0 %v1067
      %v1069 = vpop.xlane.xlu0 %1068
      %v1070 = vld [vmem:[#allocation2] sm:$0x1]
      %v1072 = vperm.slane %v1070, 0
      %v1074 = vadd.f32 %v1048, %v1072
      %v1075 = vadd.f32 %v1051, %v1072
      %v1076 = vadd.f32 %v1054, %v1072
      %v1077 = vadd.f32 %v1057, %v1072
      %v1078 = vadd.f32 %v1060, %v1072
      %v1079 = vadd.f32 %v1063, %v1072
      %v1080 = vadd.f32 %v1066, %v1072
      %v1081 = vadd.f32 %v1069, %v1072
      %v1082 = vxor.u32 %v1074, 2147483648
      %v1083 = vxor.u32 %v1075, 2147483648
      %v1084 = vxor.u32 %v1076, 2147483648
      %v1085 = vxor.u32 %v1077, 2147483648
      %v1086 = vxor.u32 %v1078, 2147483648
      %v1087 = vxor.u32 %v1079, 2147483648
      %v1088 = vxor.u32 %v1080, 2147483648
      %v1089 = vxor.u32 %v1081, 2147483648
      %v1090 = vmul.f32 %v1082, 1.442695
      %v1091 = vpow.pop %v1090
      %v1092 = vmul.f32 %v1083, 1.442695
      %v1093 = vpow.pop %v1092
      %v1094 = vmul.f32 %v1084, 1.442695
      %v1095 = vpow.pop %v1094
      %v1096 = vmul.f32 %v1085, 1.442695
      %v1097 = vpow.pop %v1096
      %v1098 = vmul.f32 %v1086, 1.442695
      %v1099 = vpow.pop %v1098
      %v1100 = vmul.f32 %v1087, 1.442695
      %v1101 = vpow.pop %v1100
      %v1102 = vmul.f32 %v1088, 1.442695
      %v1103 = vpow.pop %v1102
      %v1104 = vmul.f32 %v1089, 1.442695
      %v1105 = vpow.pop %v1104
      %v1106 = vadd.f32 %v1091, 1.0
      %v1107 = vadd.f32 %v1093, 1.0
      %v1108 = vadd.f32 %v1095, 1.0
      %v1109 = vadd.f32 %v1097, 1.0
      %v1110 = vadd.f32 %v1099, 1.0
      %v1111 = vadd.f32 %v1101, 1.0
      %v1112 = vadd.f32 %v1103, 1.0
      %v1113 = vadd.f32 %v1105, 1.0
      %v1114 = vrcp.pop %v1106
      %v1115 = vmul.f32 %v1106, %v1114
      %v1116 = vsub.f32 1.0, %v1115
      %v1117 = vmul.f32 %v1114, %v1116
      %v1118 = vadd.f32 %v1114, %v1117
      %vm1119 = vweird.f32 %v1106
      %vm1120 = vweird.f32 %v1114
      %vm1121 = vmor %vm1119, %vm1120
      %v1122 = vsel %vm1121, %v1114, %v1118
      %v1123 = vand.u32 2147483647, %v1106
      %vm1124 = vcmp.eq.f32.partialorder %v1123, 8.507059e+37
      %v1125 = vand.u32 %v1106, 2147483648
      %v1126 = vor.u32 1.1754944e-38, %v1125
      %v1127 = vsel %vm1124, %v1126, %v1122
      %v1128 = vmul.f32 1.0, %v1127
      %v1129 = vrcp.pop %v1107
      %v1130 = vmul.f32 %v1107, %v1129
      %v1131 = vsub.f32 1.0, %v1130
      %v1132 = vmul.f32 %v1129, %v1131
      %v1133 = vadd.f32 %v1129, %v1132
      %vm1134 = vweird.f32 %v1107
      %vm1135 = vweird.f32 %v1129
      %vm1136 = vmor %vm1134, %vm1135
      %v1137 = vsel %vm1136, %v1129, %v1133
      %v1138 = vand.u32 2147483647, %v1107
      %vm1139 = vcmp.eq.f32.partialorder %v1138, 8.507059e+37
      %v1140 = vand.u32 %v1107, 2147483648
      %v1141 = vor.u32 1.1754944e-38, %v1140
      %v1142 = vsel %vm1139, %v1141, %v1137
      %v1143 = vmul.f32 1.0, %v1142
      %v1144 = vrcp.pop %v1108
      %v1145 = vmul.f32 %v1108, %v1144
      %v1146 = vsub.f32 1.0, %v1145
      %v1147 = vmul.f32 %v1144, %v1146
      %v1148 = vadd.f32 %v1144, %v1147
      %vm1149 = vweird.f32 %v1108
      %vm1150 = vweird.f32 %v1144
      %vm1151 = vmor %vm1149, %vm1150
      %v1152 = vsel %vm1151, %v1144, %v1148
      %v1153 = vand.u32 2147483647, %v1108
      %vm1154 = vcmp.eq.f32.partialorder %v1153, 8.507059e+37
      %v1155 = vand.u32 %v1108, 2147483648
      %v1156 = vor.u32 1.1754944e-38, %v1155
      %v1157 = vsel %vm1154, %v1156, %v1152
      %v1158 = vmul.f32 1.0, %v1157
      %v1159 = vrcp.pop %v1109
      %v1160 = vmul.f32 %v1109, %v1159
      %v1161 = vsub.f32 1.0, %v1160
      %v1162 = vmul.f32 %v1159, %v1161
      %v1163 = vadd.f32 %v1159, %v1162
      %vm1164 = vweird.f32 %v1109
      %vm1165 = vweird.f32 %v1159
      %vm1166 = vmor %vm1164, %vm1165
      %v1167 = vsel %vm1166, %v1159, %v1163
      %v1168 = vand.u32 2147483647, %v1109
      %vm1169 = vcmp.eq.f32.partialorder %v1168, 8.507059e+37
      %v1170 = vand.u32 %v1109, 2147483648
      %v1171 = vor.u32 1.1754944e-38, %v1170
      %v1172 = vsel %vm1169, %v1171, %v1167
      %v1173 = vmul.f32 1.0, %v1172
      %v1174 = vrcp.pop %v1110
      %v1175 = vmul.f32 %v1110, %v1174
      %v1176 = vsub.f32 1.0, %v1175
      %v1177 = vmul.f32 %v1174, %v1176
      %v1178 = vadd.f32 %v1174, %v1177
      %vm1179 = vweird.f32 %v1110
      %vm1180 = vweird.f32 %v1174
      %vm1181 = vmor %vm1179, %vm1180
      %v1182 = vsel %vm1181, %v1174, %v1178
      %v1183 = vand.u32 2147483647, %v1110
      %vm1184 = vcmp.eq.f32.partialorder %v1183, 8.507059e+37
      %v1185 = vand.u32 %v1110, 2147483648
      %v1186 = vor.u32 1.1754944e-38, %v1185
      %v1187 = vsel %vm1184, %v1186, %v1182
      %v1188 = vmul.f32 1.0, %v1187
      %v1189 = vrcp.pop %v1111
      %v1190 = vmul.f32 %v1111, %v1189
      %v1191 = vsub.f32 1.0, %v1190
      %v1192 = vmul.f32 %v1189, %v1191
      %v1193 = vadd.f32 %v1189, %v1192
      %vm1194 = vweird.f32 %v1111
      %vm1195 = vweird.f32 %v1189
      %vm1196 = vmor %vm1194, %vm1195
      %v1197 = vsel %vm1196, %v1189, %v1193
      %v1198 = vand.u32 2147483647, %v1111
      %vm1199 = vcmp.eq.f32.partialorder %v1198, 8.507059e+37
      %v1200 = vand.u32 %v1111, 2147483648
      %v1201 = vor.u32 1.1754944e-38, %v1200
      %v1202 = vsel %vm1199, %v1201, %v1197
      %v1203 = vmul.f32 1.0, %v1202
      %v1204 = vrcp.pop %v1112
      %v1205 = vmul.f32 %v1112, %v1204
      %v1206 = vsub.f32 1.0, %v1205
      %v1207 = vmul.f32 %v1204, %v1206
      %v1208 = vadd.f32 %v1204, %v1207
      %vm1209 = vweird.f32 %v1112
      %vm1210 = vweird.f32 %v1204
      %vm1211 = vmor %vm1209, %vm1210
      %v1212 = vsel %vm1211, %v1204, %v1208
      %v1213 = vand.u32 2147483647, %v1112
      %vm1214 = vcmp.eq.f32.partialorder %v1213, 8.507059e+37
      %v1215 = vand.u32 %v1112, 2147483648
      %v1216 = vor.u32 1.1754944e-38, %v1215
      %v1217 = vsel %vm1214, %v1216, %v1212
      %v1218 = vmul.f32 1.0, %v1217
      %v1219 = vrcp.pop %v1113
      %v1220 = vmul.f32 %v1113, %v1219
      %v1221 = vsub.f32 1.0, %v1220
      %v1222 = vmul.f32 %v1219, %v1221
      %v1223 = vadd.f32 %v1219, %v1222
      %vm1224 = vweird.f32 %v1113
      %vm1225 = vweird.f32 %v1219
      %vm1226 = vmor %vm1224, %vm1225
      %v1227 = vsel %vm1226, %v1219, %v1223
      %v1228 = vand.u32 2147483647, %v1113
      %vm1229 = vcmp.eq.f32.partialorder %v1228, 8.507059e+37
      %v1230 = vand.u32 %v1113, 2147483648
      %v1231 = vor.u32 1.1754944e-38, %v1230
      %v1232 = vsel %vm1229, %v1231, %v1227
      %v1233 = vmul.f32 1.0, %v1232
      %1235 = vset.pattern.permute.xlu0 0
      %1236 = vperm.xlu0 %1235, %v1128
      %v1237 = vpop.permute.xlu0 %1236
      %1240 = vset.pattern.permute.xlu0 0
      %1241 = vperm.xlu0 %1240, %v1143
      %v1242 = vpop.permute.xlu0 %1241
      %1245 = vset.pattern.permute.xlu0 0
      %1246 = vperm.xlu0 %1245, %v1158
      %v1247 = vpop.permute.xlu0 %1246
      %1250 = vset.pattern.permute.xlu0 0
      %1251 = vperm.xlu0 %1250, %v1173
      %v1252 = vpop.permute.xlu0 %1251
      %1255 = vset.pattern.permute.xlu0 0
      %1256 = vperm.xlu0 %1255, %v1188
      %v1257 = vpop.permute.xlu0 %1256
      %1260 = vset.pattern.permute.xlu0 0
      %1261 = vperm.xlu0 %1260, %v1203
      %v1262 = vpop.permute.xlu0 %1261
      %1265 = vset.pattern.permute.xlu0 0
      %1266 = vperm.xlu0 %1265, %v1218
      %v1267 = vpop.permute.xlu0 %1266
      %1270 = vset.pattern.permute.xlu0 0
      %1271 = vperm.xlu0 %1270, %v1233
      %v1272 = vpop.permute.xlu0 %1271
      %v1274 = vmul.f32 %v1026, %v1237
      %v1275 = vmul.f32 %v1027, %v1242
      %v1276 = vmul.f32 %v1028, %v1247
      %v1277 = vmul.f32 %v1029, %v1252
      %v1278 = vmul.f32 %v1030, %v1257
      %v1279 = vmul.f32 %v1031, %v1262
      %v1280 = vmul.f32 %v1032, %v1267
      %v1281 = vmul.f32 %v1033, %v1272
      %1282 = vset.pattern.permute.xlu0 2
      %1283 = vperm.xlu0 %1282, %v345
      %v1284 = vpop.permute.xlu0 %1283
      %1286 = vset.pattern.permute.xlu0 2
      %1287 = vperm.xlu0 %1286, %v346
      %v1288 = vpop.permute.xlu0 %1287
      %1290 = vset.pattern.permute.xlu0 2
      %1291 = vperm.xlu0 %1290, %v347
      %v1292 = vpop.permute.xlu0 %1291
      %1294 = vset.pattern.permute.xlu0 2
      %1295 = vperm.xlu0 %1294, %v348
      %v1296 = vpop.permute.xlu0 %1295
      %1298 = vset.pattern.permute.xlu0 2
      %1299 = vperm.xlu0 %1298, %v349
      %v1300 = vpop.permute.xlu0 %1299
      %1302 = vset.pattern.permute.xlu0 2
      %1303 = vperm.xlu0 %1302, %v350
      %v1304 = vpop.permute.xlu0 %1303
      %1306 = vset.pattern.permute.xlu0 2
      %1307 = vperm.xlu0 %1306, %v351
      %v1308 = vpop.permute.xlu0 %1307
      %1310 = vset.pattern.permute.xlu0 2
      %1311 = vperm.xlu0 %1310, %v352
      %v1312 = vpop.permute.xlu0 %1311
      %v1314 = vmul.f32 %v1274, %v1284
      %v1315 = vmul.f32 %v1275, %v1288
      %v1316 = vmul.f32 %v1276, %v1292
      %v1317 = vmul.f32 %v1277, %v1296
      %v1318 = vmul.f32 %v1278, %v1300
      %v1319 = vmul.f32 %v1279, %v1304
      %v1320 = vmul.f32 %v1280, %v1308
      %v1321 = vmul.f32 %v1281, %v1312
      %v1322 = vld [vmem:[%s335] sm:$0xff]
      %v1323 = vld [vmem:[%s335 + $0x8] sm:$0xff]
      %v1324 = vld [vmem:[%s335 + $0x10] sm:$0xff]
      %v1325 = vld [vmem:[%s335 + $0x18] sm:$0xff]
      %1326 = vxpose.xlu0.b32.start [1/16] %v1314, 128
      %1327 = vxpose.xlu0.b32.cont [2/16] %v1315, 128
      %1328 = vxpose.xlu0.b32.cont [3/16] %v1316, 128
      %1329 = vxpose.xlu0.b32.cont [4/16] %v1317, 128
      %1330 = vxpose.xlu0.b32.cont [5/16] %v1318, 128
      %1331 = vxpose.xlu0.b32.cont [6/16] %v1319, 128
      %1332 = vxpose.xlu0.b32.cont [7/16] %v1320, 128
      %1333 = vxpose.xlu0.b32.cont [8/16] %v1321, 128
      %1334 = vxpose.xlu0.b32.cont [9/16] 0.0, 128
      %1335 = vxpose.xlu0.b32.cont [10/16] 0.0, 128
      %1336 = vxpose.xlu0.b32.cont [11/16] 0.0, 128
      %1337 = vxpose.xlu0.b32.cont [12/16] 0.0, 128
      %1338 = vxpose.xlu0.b32.cont [13/16] 0.0, 128
      %1339 = vxpose.xlu0.b32.cont [14/16] 0.0, 128
      %1340 = vxpose.xlu0.b32.cont [15/16] 0.0, 128
      %1341 = vxpose.xlu0.b32.end [16/16] 0.0, 128
      %v1342 = vpop.trf.xlu0
      %v1343 = vpop.trf.xlu0
      %v1344 = vpop.trf.xlu0
      %v1345 = vpop.trf.xlu0
      %v1346 = vpop.trf.xlu0
      %v1347 = vpop.trf.xlu0
      %v1348 = vpop.trf.xlu0
      %v1349 = vpop.trf.xlu0
      %v1350 = vpop.trf.xlu0
      %v1351 = vpop.trf.xlu0
      %v1352 = vpop.trf.xlu0
      %v1353 = vpop.trf.xlu0
      %v1354 = vpop.trf.xlu0
      %v1355 = vpop.trf.xlu0
      %v1356 = vpop.trf.xlu0
      %v1357 = vpop.trf.xlu0
      %vm1358 = vcmask 523264
      %v1360 = vsel %vm1358, %v1342, 0
      %v1363 = vsel %vm1358, %v1343, 0
      %v1366 = vsel %vm1358, %v1344, 0
      %v1369 = vsel %vm1358, %v1345, 0
      %1371 = vmatpush.msra.mxu0 0.0
      %1372 = vmatpush.msra.mxu0 0.0
      %1373 = vmatpush.msra.mxu0 0.0
      %1374 = vmatpush.msra.mxu0 0.0
      %1375 = vmatpush.msra.mxu0 0.0
      %1376 = vmatpush.msra.mxu0 0.0
      %1377 = vmatpush.msra.mxu0 0.0
      %1378 = vmatpush.msra.mxu0 0.0
      %1379 = vmatpush.msra.mxu0 %v458
      %1380 = vmatpush.msra.mxu0 %v457
      %1381 = vmatpush.msra.mxu0 %v456
      %1382 = vmatpush.msra.mxu0 %v455
      %1383 = vmatpush.msra.mxu0 %v454
      %1384 = vmatpush.msra.mxu0 %v453
      %1385 = vmatpush.msra.mxu0 %v452
      %1386 = vmatpush.msra.mxu0 %v451
      %1387 = vmatmul.f32.gmra.mxu0 %v1360
      %v1388 = vpop.f32.mrf.mxu0
      %v1389 = vadd.f32 0.0, %v1388
      %1390 = vmatmul.f32.gmra.mxu0 %v1363
      %v1391 = vpop.f32.mrf.mxu0
      %v1392 = vadd.f32 0.0, %v1391
      %1393 = vmatmul.f32.gmra.mxu0 %v1366
      %v1394 = vpop.f32.mrf.mxu0
      %v1395 = vadd.f32 0.0, %v1394
      %1396 = vmatmul.f32.gmra.mxu0 %v1369
      %v1397 = vpop.f32.mrf.mxu0
      %v1398 = vadd.f32 0.0, %v1397
      %1399 = vdwg.mxu0
      %v1400 = vadd.f32 %v1322, %v1389
      %v1401 = vadd.f32 %v1323, %v1392
      %v1402 = vadd.f32 %v1324, %v1395
      %v1403 = vadd.f32 %v1325, %v1398
      %vm1404 = vcmask 130048
      %1405 = vst.msk [vmem:[%s335] sm:$0xff] %vm1404, %v1400
      %1406 = vst.msk [vmem:[%s335 + $0x8] sm:$0xff] %vm1404, %v1401
      %1407 = vst.msk [vmem:[%s335 + $0x10] sm:$0xff] %vm1404, %v1402
      %1408 = vst.msk [vmem:[%s335 + $0x18] sm:$0xff] %vm1404, %v1403
      %p1409 = scmp.lt.s32.totalorder %s25, 1
      %s1410 = scalar_select %p1409, %s25, 1
      %s1411 = smul.addr %s1410, 4
      %s1412 = smul.addr %s1411, 8
      %s1413 = scalar_lea.vmem %s8, %s1412
      // Predicated region
      $region57: #{e3_block_forward.3} parent=51 // pred_check
        %p1414 = pneg %p228
      $region58: #{e3_block_forward.3} parent=51 // pred_check_branch
        %1416 = sbr.rel (%p1414) target = $region60
      $region59: #{e3_block_forward.3} parent=51 // pred_region
        _
      $region60: #{e3_block_forward.3} parent=51 // pred_fallthru
        _
    $region52: #{e3_block_forward.3} parent=5 // pred_fallthru
      _
    %p1417 = scmp.le.s32.totalorder 2, %s16
    // Predicated region
    $region61: #{e3_block_forward.3} parent=5 // pred_check
      %p1418 = pneg %p1417
    $region62: #{e3_block_forward.3} parent=5 // pred_check_branch
      %1420 = sbr.rel (%p1418) target = $region64
    $region63: #{e3_block_forward.3} parent=5 // pred_region
      %s1421 = ssub.s32 %s16, 2
      // Predicated region
      $region65: #{e3_block_forward.3} parent=63 // pred_check
        %p1422 = pneg %p234
      $region66: #{e3_block_forward.3} parent=63 // pred_check_branch
        %1424 = sbr.rel (%p1422) target = $region68
      $region67: #{e3_block_forward.3} parent=63 // pred_region
        %p1425 = scmp.lt.s32.totalorder %s27, 1
        %s1426 = scalar_select %p1425, %s27, 1
        %s1427 = smul.addr %s1426, 4
        %s1428 = smul.addr %s1427, 8
        %s1429 = scalar_lea.vmem %s8, %s1428
      $region68: #{e3_block_forward.3} parent=63 // pred_fallthru
        _
    $region64: #{e3_block_forward.3} parent=5 // pred_fallthru
      _
  $region6: #{e3_block_forward.3} parent=0 // loop_footer
    %s20 = sadd.s32 1, %s16
  $region7: #{e3_block_forward.3} parent=0 // loop_footer_branch
    %15 = sbr.rel target = $region3
  $region8: #{e3_block_forward.3} parent=0 // loop_exit
    _

</llo_original>
